<compile_context>
chip_gen: v7x
topology: tpu7x:2x2x1
jax: 0.10.0
libtpu: 0.0.40
codegen_flags: <defaults>
</compile_context>

<pallas_src>
import functools
import math

import jax
import jax.numpy as jnp
import numpy as np
from jax.experimental import pallas as pl
from jax.experimental.pallas import tpu as pltpu

NUM_HEADS = 8  # nn.MultiheadAttention(d_model, 8, ...)


def _attn_pool_kernel(x_ref, wqkv_ref, bqkv_ref, o_ref, qkv_ref, acc_ref, *,
                      num_heads, n_valid):
    """One grid step = one tile of spatial positions (HW on lanes).

    x_ref   : (L, E, tn)         input tile (compute dtype), HW on lanes
    wqkv_ref: (3E, E)            fused in_proj weight, head-interleaved rows,
                                 q rows pre-scaled by 1/sqrt(head_dim)
    bqkv_ref: (3E, 1)   f32      fused in_proj bias (same permutation/scaling)
    o_ref   : (1, L, E) f32      per-parallel-slice pooled context (permuted channels)
    qkv_ref : (3E, L*tn) f32     scratch: projected q|k|v for the current tile
    acc_ref : (L, E, tn) f32     scratch: deferred-pooling context accumulator
    """
    L, E, tn = x_ref.shape
    H = num_heads
    hd = E // H
    i = pl.program_id(1)

    @pl.when(i == 0)
    def _init():
        acc_ref[...] = jnp.zeros_like(acc_ref)

    # ---- (1) fused QKV projection: one (3E,E)x(E, L*tn) MXU matmul, bias once --
    x_cat = jnp.concatenate([x_ref[l] for l in range(L)], axis=1)       # (E, L*tn)
    qkv_ref[...] = jnp.dot(wqkv_ref[...], x_cat,
                           preferred_element_type=jnp.float32) + bqkv_ref[...]

    # Lane mask for zero-padded spatial positions (static python flag -> no cost
    # at all when HW is already a multiple of 128).
    if n_valid is not None:
        start = (pl.program_id(0) * pl.num_programs(1) + i) * tn
        lane = jax.lax.broadcasted_iota(jnp.int32, (1, tn), 1)
        pool_mask = (lane < (n_valid - start)).astype(jnp.float32)      # (1, tn)
    else:
        pool_mask = None

    # ---- (2a) per-head scores, all heads at once -------------------------------
    # Rows are head-interleaved (row r <-> head r % H), so the per-head dot over
    # head_dim is a sum over hd aligned (H, tn) sublane-tile slabs: pure VPU work.
    s = [[None] * L for _ in range(L)]                                  # each (H, tn)
    for blk in range(hd):
        r = blk * H
        qs = [qkv_ref[r:r + H, lq * tn:(lq + 1) * tn] for lq in range(L)]
        ks = [qkv_ref[E + r:E + r + H, lk * tn:(lk + 1) * tn] for lk in range(L)]
        for lq in range(L):
            for lk in range(L):
                p = qs[lq] * ks[lk]
                s[lq][lk] = p if s[lq][lk] is None else s[lq][lk] + p

    # ---- (2b) softmax over the tiny key axis, fully dense (H, tn) EUP exps -----
    wgt = [[None] * L for _ in range(L)]
    for lq in range(L):
        m = s[lq][0]
        for lk in range(1, L):
            m = jnp.maximum(m, s[lq][lk])
        e = [jnp.exp(s[lq][lk] - m) for lk in range(L)]
        den = e[0]
        for lk in range(1, L):
            den = den + e[lk]
        inv = 1.0 / den
        for lk in range(L):
            wgt[lq][lk] = e[lk] * inv                                   # (H, tn)

    # ---- (2c) context, accumulated slab-wise into acc_ref (deferred pooling) ---
    # V rows are head-interleaved too, so the (H, tn) softmax-weight tile applies
    # unchanged to every hd slab: no per-head broadcast / sublane extract needed.
    for blk in range(hd):
        r = blk * H
        vs = [qkv_ref[2 * E + r:2 * E + r + H, lk * tn:(lk + 1) * tn]
              for lk in range(L)]
        for lq in range(L):
            ctx = wgt[lq][0] * vs[0]
            for lk in range(1, L):
                ctx = ctx + wgt[lq][lk] * vs[lk]
            if pool_mask is not None:
                ctx = ctx * pool_mask
            acc_ref[lq, r:r + H, :] = acc_ref[lq, r:r + H, :] + ctx

    # ---- (3) finalize: a single lane reduction per parallel slice --------------
    @pl.when(i == pl.num_programs(1) - 1)
    def _finalize():
        o_ref[0] = jnp.sum(acc_ref[...], axis=-1)                       # (L, E)


def _choose_tile_n(n_pad, cap=512):
    """Largest power-of-two multiple of 128 dividing the (padded) spatial extent,
    capped so the f32 qkv scratch / live vreg footprint stays modest."""
    tn = 128
    while n_pad % (2 * tn) == 0 and 2 * tn <= cap:
        tn *= 2
    return tn


def _default_num_parallel(n_blocks):
    """The megacore split only pays on 2-TensorCore chips (v7x); on v5e/v6e the
    grid is a serial loop and the split is pure overhead."""
    if n_blocks < 2 or n_blocks % 2 != 0:
        return 1
    try:
        kind = jax.devices()[0].device_kind.lower()
    except Exception:
        kind = ""
    return 2 if "v7" in kind else 1


def _vmem_limit_bytes(seq_len, d_model, tile_n, itemsize):
    x_blk = 2 * seq_len * d_model * tile_n * itemsize                 # double-buffered x
    weights = 3 * d_model * d_model * itemsize + 3 * d_model * 4
    scratch = (3 * d_model * seq_len * tile_n                          # qkv (f32)
               + seq_len * d_model * tile_n) * 4                       # acc (f32)
    out = 2 * seq_len * d_model * 4
    need = x_blk + weights + scratch + out
    # Leave headroom below physical VMEM on every generation (v7x has 64 MiB/TC).
    return int(min(max(2 * need, 8 * 1024 * 1024), 48 * 1024 * 1024))


def attention_pool_2d(x, params, num_heads=NUM_HEADS, *, tile_n=None,
                      num_parallel=None, compute_dtype=jnp.bfloat16):
    """x: (B, C, H, W) float32 -> (B, C) float32  (== AttentionPool2D.forward, eval)."""
    B, C, H, W = x.shape
    L, E, N = B, C, H * W
    assert E % num_heads == 0
    hd = E // num_heads
    itemsize = jnp.dtype(compute_dtype).itemsize

    # ------------ parameter prep (all folds / permutations are free at runtime) --
    # Head-interleaved channel permutation: new row r holds original channel
    # (r % num_heads) * hd + r // num_heads, i.e. row r belongs to head r % 8.
    perm = (np.arange(E) % num_heads) * hd + (np.arange(E) // num_heads)
    w_in = params['in_proj_weight']                      # (3E, E), rows = [q; k; v]
    b_in = params['in_proj_bias']                        # (3E,)
    scale = 1.0 / math.sqrt(hd)
    w_qkv = jnp.concatenate([w_in[:E][perm] * scale,     # q rows pre-scaled
                             w_in[E:2 * E][perm],
                             w_in[2 * E:][perm]], axis=0).astype(compute_dtype)
    b_qkv = jnp.concatenate([b_in[:E][perm] * scale,
                             b_in[E:2 * E][perm],
                             b_in[2 * E:][perm]]).reshape(3 * E, 1).astype(jnp.float32)
    # Epilogue out-projection: columns permuted to undo the channel interleave,
    # mean over HW folded in, bias added once outside the kernel.
    w_o = (params['out_proj_weight'][:, perm] * (1.0 / N)).astype(jnp.float32)
    b_o = params['out_proj_bias'].astype(jnp.float32)

    # ------------ input layout: (B,C,H,W) -> (L, E, N_pad); HW lands on lanes ----
    x_r = x.reshape(B, C, N).astype(compute_dtype)
    n_pad = ((N + 127) // 128) * 128
    if n_pad != N:
        x_r = jnp.pad(x_r, ((0, 0), (0, 0), (0, n_pad - N)))

    # ------------ tiling / grid ---------------------------------------------------
    if tile_n is None:
        tile_n = _choose_tile_n(n_pad, cap=512)
    assert n_pad % tile_n == 0 and tile_n % 128 == 0
    n_blocks = n_pad // tile_n
    if num_parallel is None:
        num_parallel = _default_num_parallel(n_blocks)
    assert n_blocks % num_parallel == 0
    n_inner = n_blocks // num_parallel

    kernel = functools.partial(_attn_pool_kernel, num_heads=num_heads,
                               n_valid=(N if n_pad != N else None))

    partials = pl.pallas_call(
        kernel,
        out_shape=jax.ShapeDtypeStruct((num_parallel, L, E), jnp.float32),
        grid_spec=pltpu.PrefetchScalarGridSpec(
            num_scalar_prefetch=0,
            grid=(num_parallel, n_inner),
            in_specs=[
                pl.BlockSpec((L, E, tile_n), lambda p, i: (0, 0, p * n_inner + i)),
                pl.BlockSpec((3 * E, E), lambda p, i: (0, 0)),   # resident weight
                pl.BlockSpec((3 * E, 1), lambda p, i: (0, 0)),   # resident bias
            ],
            out_specs=pl.BlockSpec((1, L, E), lambda p, i: (p, 0, 0)),
            scratch_shapes=[
                pltpu.VMEM((3 * E, L * tile_n), jnp.float32),    # projected q|k|v
                pltpu.VMEM((L, E, tile_n), jnp.float32),         # pooled-ctx accumulator
            ],
        ),
        compiler_params=pltpu.CompilerParams(
            dimension_semantics=("parallel", "arbitrary"),       # p-axis shards on v7x
            vmem_limit_bytes=_vmem_limit_bytes(L, E, tile_n, itemsize),
        ),
    )(x_r, w_qkv, b_qkv)

    # Tiny XLA epilogue: combine per-core partials, out-project, add bias.
    pooled = partials.sum(axis=0)                        # (L, E), permuted channels
    return pooled @ w_o.T + b_o                          # (B, C)


def init_params(key, d_model):
    """Deterministic synthetic weights in PyTorch nn.MultiheadAttention shapes."""
    E = d_model
    k1, k2, k3, k4 = jax.random.split(key, 4)
    return {
        'in_proj_weight': jax.random.normal(k1, (3 * E, E), jnp.float32) * 0.05,
        'in_proj_bias': jax.random.normal(k2, (3 * E,), jnp.float32) * 0.05,
        'out_proj_weight': jax.random.normal(k3, (E, E), jnp.float32) * 0.05,
        'out_proj_bias': jax.random.normal(k4, (E,), jnp.float32) * 0.05,
    }


def reference(x, params, num_heads=NUM_HEADS):
    """Pure-JAX replica of the PyTorch forward (eval mode) for verification."""
    B, C, H, W = x.shape
    E = C
    hd = E // num_heads
    xs = jnp.transpose(x.reshape(B, C, H * W), (0, 2, 1))   # (L=B, N=HW, E)
    L, N, _ = xs.shape
    w_in, b_in = params['in_proj_weight'], params['in_proj_bias']
    q = xs @ w_in[:E].T + b_in[:E]
    k = xs @ w_in[E:2 * E].T + b_in[E:2 * E]
    v = xs @ w_in[2 * E:].T + b_in[2 * E:]
    q = q / jnp.sqrt(jnp.float32(hd))

    def split(t):  # (L, N, E) -> (N, heads, L, hd)
        return jnp.transpose(t.reshape(L, N, num_heads, hd), (1, 2, 0, 3))

    qh, kh, vh = split(q), split(k), split(v)
    s = jnp.einsum('nhld,nhmd->nhlm', qh, kh)
    p = jax.nn.softmax(s, axis=-1)
    o = jnp.einsum('nhlm,nhmd->nhld', p, vh)
    o = jnp.transpose(o, (2, 0, 1, 3)).reshape(L, N, E)
    o = o @ params['out_proj_weight'].T + params['out_proj_bias']
    return jnp.mean(o, axis=1)                              # (B, C)


if __name__ == "__main__":
    key = jax.random.PRNGKey(0)
    kx, kp, kx2 = jax.random.split(key, 3)
    # d_model must be divisible by 8 heads; 64 keeps head_dim (=8) sublane-aligned.
    B, C, H, W = 2, 64, 16, 16          # -> L=2, E=64, HW=256 spatial tokens
    x = jax.random.normal(kx, (B, C, H, W), jnp.float32)
    params = init_params(kp, C)
    ref = reference(x, params)

    # (a) f32, auto tiling (tile_n=256, single block, fused L*tn=512-wide QKV matmul).
    out_a = jax.block_until_ready(
        attention_pool_2d(x, params, compute_dtype=jnp.float32))
    assert out_a.shape == (B, C)
    np.testing.assert_allclose(np.asarray(out_a), np.asarray(ref), atol=1e-4, rtol=1e-4)

    # (b) f32, two 128-wide tiles, single parallel slice -> cross-tile accumulation.
    out_b = jax.block_until_ready(
        attention_pool_2d(x, params, tile_n=128, num_parallel=1,
                          compute_dtype=jnp.float32))
    np.testing.assert_allclose(np.asarray(out_b), np.asarray(ref), atol=1e-4, rtol=1e-4)

    # (c) explicit megacore split (v7x-style partial sums; still correct on 1-TC chips).
    out_c = jax.block_until_ready(
        attention_pool_2d(x, params, tile_n=128, num_parallel=2,
                          compute_dtype=jnp.float32))
    np.testing.assert_allclose(np.asarray(out_c), np.asarray(ref), atol=1e-4, rtol=1e-4)

    # (d) default bf16 MXU/HBM operands (f32 softmax & accumulation), auto tiling.
    out_d = jax.block_until_ready(attention_pool_2d(x, params))
    np.testing.assert_allclose(np.asarray(out_d), np.asarray(ref), atol=2e-2, rtol=2e-2)

    # (e) CLIP-style non-128-multiple HW (7x7=49): padded lanes + pool-only mask.
    x2 = jax.random.normal(kx2, (B, C, 7, 7), jnp.float32)
    ref2 = reference(x2, params)
    out_e = jax.block_until_ready(
        attention_pool_2d(x2, params, compute_dtype=jnp.float32))
    np.testing.assert_allclose(np.asarray(out_e), np.asarray(ref2), atol=1e-4, rtol=1e-4)

    print("KERNEL_OK")
</pallas_src>

<mosaic_0001>
module attributes {stable_mosaic.version = 11 : i64} {
  func.func @_attn_pool_kernel(%arg0: i32, %arg1: i32, %arg2: memref<2x64x256xf32, #tpu.memory_space<vmem>>, %arg3: memref<192x64xf32, #tpu.memory_space<vmem>>, %arg4: memref<192x1xf32, #tpu.memory_space<vmem>>, %arg5: memref<1x2x64xf32, #tpu.memory_space<vmem>>, %arg6: memref<192x512xf32, #tpu.memory_space<vmem>>, %arg7: memref<2x64x256xf32, #tpu.memory_space<vmem>>) attributes {dimension_semantics = [#tpu.dimension_semantics<parallel>, #tpu.dimension_semantics<arbitrary>], iteration_bounds = array<i64: 1, 1>, scalar_prefetch = 0 : i64, scratch_operands = 2 : i64, tpu.core_type = #tpu.core_type<tc>, window_params = [{transform_indices = @transform_0, window_bounds = array<i64: 2, 64, 256>}, {pipeline_mode = #tpu.pipeline_mode<synchronous>, transform_indices = @transform_1, window_bounds = array<i64: 192, 64>}, {pipeline_mode = #tpu.pipeline_mode<synchronous>, transform_indices = @transform_2, window_bounds = array<i64: 192, 1>}, {transform_indices = @transform_3, window_bounds = array<i64: 1, 2, 64>}]} {
    %c0_i32 = arith.constant 0 : i32
    %0 = arith.cmpi eq, %arg1, %c0_i32 : i32
    %1 = arith.extui %0 : i1 to i32
    %c0_i32_0 = arith.constant 0 : i32
    %2 = arith.cmpi ne, %1, %c0_i32_0 : i32
    scf.if %2 {
      %cst_183 = arith.constant 0.000000e+00 : f32
      %289 = vector.broadcast %cst_183 : f32 to vector<2x64x256xf32>
      %c0_184 = arith.constant 0 : index
      %c0_185 = arith.constant 0 : index
      %c0_186 = arith.constant 0 : index
      %290 = vector.load %arg7[%c0_184, %c0_185, %c0_186] : memref<2x64x256xf32, #tpu.memory_space<vmem>>, vector<2x64x256xf32>
      tpu.vector_store %arg7[%c0_184, %c0_185, %c0_186], %289 {strides = array<i32>} : memref<2x64x256xf32, #tpu.memory_space<vmem>>, vector<2x64x256xf32>,
    } else {
    }
    %c0 = arith.constant 0 : index
    %c0_1 = arith.constant 0 : index
    %c0_2 = arith.constant 0 : index
    %3 = vector.load %arg2[%c0, %c0_1, %c0_2] : memref<2x64x256xf32, #tpu.memory_space<vmem>>, vector<1x64x256xf32>
    %4 = vector.shape_cast %3 : vector<1x64x256xf32> to vector<64x256xf32>
    %c1 = arith.constant 1 : index
    %c0_3 = arith.constant 0 : index
    %c0_4 = arith.constant 0 : index
    %5 = vector.load %arg2[%c1, %c0_3, %c0_4] : memref<2x64x256xf32, #tpu.memory_space<vmem>>, vector<1x64x256xf32>
    %6 = vector.shape_cast %5 : vector<1x64x256xf32> to vector<64x256xf32>
    %7 = tpu.concatenate %4, %6 in 1 : vector<64x256xf32>, vector<64x256xf32> -> vector<64x512xf32>
    %c0_5 = arith.constant 0 : index
    %c0_6 = arith.constant 0 : index
    %8 = vector.load %arg3[%c0_5, %c0_6] : memref<192x64xf32, #tpu.memory_space<vmem>>, vector<192x64xf32>
    %cst = arith.constant dense<0.000000e+00> : vector<192x512xf32>
    %9 = tpu.matmul %8, %7, %cst {dimension_numbers = #tpu.dot_dimension_numbers<[1], [0], [0], [1], [0, 0, 1, 1], [], []>} : vector<192x64xf32>, vector<64x512xf32>, vector<192x512xf32> -> vector<192x512xf32>
    %c0_7 = arith.constant 0 : index
    %c0_8 = arith.constant 0 : index
    %10 = vector.load %arg4[%c0_7, %c0_8] : memref<192x1xf32, #tpu.memory_space<vmem>>, vector<192x1xf32>
    %11 = vector.broadcast %10 : vector<192x1xf32> to vector<192x512xf32>
    %12 = arith.addf %9, %11 : vector<192x512xf32>
    %c0_9 = arith.constant 0 : index
    %c0_10 = arith.constant 0 : index
    %13 = vector.load %arg6[%c0_9, %c0_10] : memref<192x512xf32, #tpu.memory_space<vmem>>, vector<192x512xf32>
    tpu.vector_store %arg6[%c0_9, %c0_10], %12 {strides = array<i32>} : memref<192x512xf32, #tpu.memory_space<vmem>>, vector<192x512xf32>,
    %c0_11 = arith.constant 0 : index
    %c0_12 = arith.constant 0 : index
    %14 = vector.load %arg6[%c0_11, %c0_12] : memref<192x512xf32, #tpu.memory_space<vmem>>, vector<8x256xf32>
    %c0_13 = arith.constant 0 : index
    %c256 = arith.constant 256 : index
    %15 = vector.load %arg6[%c0_13, %c256] : memref<192x512xf32, #tpu.memory_space<vmem>>, vector<8x256xf32>
    %c64 = arith.constant 64 : index
    %c0_14 = arith.constant 0 : index
    %16 = vector.load %arg6[%c64, %c0_14] : memref<192x512xf32, #tpu.memory_space<vmem>>, vector<8x256xf32>
    %c64_15 = arith.constant 64 : index
    %c256_16 = arith.constant 256 : index
    %17 = vector.load %arg6[%c64_15, %c256_16] : memref<192x512xf32, #tpu.memory_space<vmem>>, vector<8x256xf32>
    %18 = arith.mulf %14, %16 : vector<8x256xf32>
    %19 = arith.mulf %14, %17 : vector<8x256xf32>
    %20 = arith.mulf %15, %16 : vector<8x256xf32>
    %21 = arith.mulf %15, %17 : vector<8x256xf32>
    %c8 = arith.constant 8 : index
    %c0_17 = arith.constant 0 : index
    %22 = vector.load %arg6[%c8, %c0_17] : memref<192x512xf32, #tpu.memory_space<vmem>>, vector<8x256xf32>
    %c8_18 = arith.constant 8 : index
    %c256_19 = arith.constant 256 : index
    %23 = vector.load %arg6[%c8_18, %c256_19] : memref<192x512xf32, #tpu.memory_space<vmem>>, vector<8x256xf32>
    %c72 = arith.constant 72 : index
    %c0_20 = arith.constant 0 : index
    %24 = vector.load %arg6[%c72, %c0_20] : memref<192x512xf32, #tpu.memory_space<vmem>>, vector<8x256xf32>
    %c72_21 = arith.constant 72 : index
    %c256_22 = arith.constant 256 : index
    %25 = vector.load %arg6[%c72_21, %c256_22] : memref<192x512xf32, #tpu.memory_space<vmem>>, vector<8x256xf32>
    %26 = arith.mulf %22, %24 : vector<8x256xf32>
    %27 = arith.addf %18, %26 : vector<8x256xf32>
    %28 = arith.mulf %22, %25 : vector<8x256xf32>
    %29 = arith.addf %19, %28 : vector<8x256xf32>
    %30 = arith.mulf %23, %24 : vector<8x256xf32>
    %31 = arith.addf %20, %30 : vector<8x256xf32>
    %32 = arith.mulf %23, %25 : vector<8x256xf32>
    %33 = arith.addf %21, %32 : vector<8x256xf32>
    %c16 = arith.constant 16 : index
    %c0_23 = arith.constant 0 : index
    %34 = vector.load %arg6[%c16, %c0_23] : memref<192x512xf32, #tpu.memory_space<vmem>>, vector<8x256xf32>
    %c16_24 = arith.constant 16 : index
    %c256_25 = arith.constant 256 : index
    %35 = vector.load %arg6[%c16_24, %c256_25] : memref<192x512xf32, #tpu.memory_space<vmem>>, vector<8x256xf32>
    %c80 = arith.constant 80 : index
    %c0_26 = arith.constant 0 : index
    %36 = vector.load %arg6[%c80, %c0_26] : memref<192x512xf32, #tpu.memory_space<vmem>>, vector<8x256xf32>
    %c80_27 = arith.constant 80 : index
    %c256_28 = arith.constant 256 : index
    %37 = vector.load %arg6[%c80_27, %c256_28] : memref<192x512xf32, #tpu.memory_space<vmem>>, vector<8x256xf32>
    %38 = arith.mulf %34, %36 : vector<8x256xf32>
    %39 = arith.addf %27, %38 : vector<8x256xf32>
    %40 = arith.mulf %34, %37 : vector<8x256xf32>
    %41 = arith.addf %29, %40 : vector<8x256xf32>
    %42 = arith.mulf %35, %36 : vector<8x256xf32>
    %43 = arith.addf %31, %42 : vector<8x256xf32>
    %44 = arith.mulf %35, %37 : vector<8x256xf32>
    %45 = arith.addf %33, %44 : vector<8x256xf32>
    %c24 = arith.constant 24 : index
    %c0_29 = arith.constant 0 : index
    %46 = vector.load %arg6[%c24, %c0_29] : memref<192x512xf32, #tpu.memory_space<vmem>>, vector<8x256xf32>
    %c24_30 = arith.constant 24 : index
    %c256_31 = arith.constant 256 : index
    %47 = vector.load %arg6[%c24_30, %c256_31] : memref<192x512xf32, #tpu.memory_space<vmem>>, vector<8x256xf32>
    %c88 = arith.constant 88 : index
    %c0_32 = arith.constant 0 : index
    %48 = vector.load %arg6[%c88, %c0_32] : memref<192x512xf32, #tpu.memory_space<vmem>>, vector<8x256xf32>
    %c88_33 = arith.constant 88 : index
    %c256_34 = arith.constant 256 : index
    %49 = vector.load %arg6[%c88_33, %c256_34] : memref<192x512xf32, #tpu.memory_space<vmem>>, vector<8x256xf32>
    %50 = arith.mulf %46, %48 : vector<8x256xf32>
    %51 = arith.addf %39, %50 : vector<8x256xf32>
    %52 = arith.mulf %46, %49 : vector<8x256xf32>
    %53 = arith.addf %41, %52 : vector<8x256xf32>
    %54 = arith.mulf %47, %48 : vector<8x256xf32>
    %55 = arith.addf %43, %54 : vector<8x256xf32>
    %56 = arith.mulf %47, %49 : vector<8x256xf32>
    %57 = arith.addf %45, %56 : vector<8x256xf32>
    %c32 = arith.constant 32 : index
    %c0_35 = arith.constant 0 : index
    %58 = vector.load %arg6[%c32, %c0_35] : memref<192x512xf32, #tpu.memory_space<vmem>>, vector<8x256xf32>
    %c32_36 = arith.constant 32 : index
    %c256_37 = arith.constant 256 : index
    %59 = vector.load %arg6[%c32_36, %c256_37] : memref<192x512xf32, #tpu.memory_space<vmem>>, vector<8x256xf32>
    %c96 = arith.constant 96 : index
    %c0_38 = arith.constant 0 : index
    %60 = vector.load %arg6[%c96, %c0_38] : memref<192x512xf32, #tpu.memory_space<vmem>>, vector<8x256xf32>
    %c96_39 = arith.constant 96 : index
    %c256_40 = arith.constant 256 : index
    %61 = vector.load %arg6[%c96_39, %c256_40] : memref<192x512xf32, #tpu.memory_space<vmem>>, vector<8x256xf32>
    %62 = arith.mulf %58, %60 : vector<8x256xf32>
    %63 = arith.addf %51, %62 : vector<8x256xf32>
    %64 = arith.mulf %58, %61 : vector<8x256xf32>
    %65 = arith.addf %53, %64 : vector<8x256xf32>
    %66 = arith.mulf %59, %60 : vector<8x256xf32>
    %67 = arith.addf %55, %66 : vector<8x256xf32>
    %68 = arith.mulf %59, %61 : vector<8x256xf32>
    %69 = arith.addf %57, %68 : vector<8x256xf32>
    %c40 = arith.constant 40 : index
    %c0_41 = arith.constant 0 : index
    %70 = vector.load %arg6[%c40, %c0_41] : memref<192x512xf32, #tpu.memory_space<vmem>>, vector<8x256xf32>
    %c40_42 = arith.constant 40 : index
    %c256_43 = arith.constant 256 : index
    %71 = vector.load %arg6[%c40_42, %c256_43] : memref<192x512xf32, #tpu.memory_space<vmem>>, vector<8x256xf32>
    %c104 = arith.constant 104 : index
    %c0_44 = arith.constant 0 : index
    %72 = vector.load %arg6[%c104, %c0_44] : memref<192x512xf32, #tpu.memory_space<vmem>>, vector<8x256xf32>
    %c104_45 = arith.constant 104 : index
    %c256_46 = arith.constant 256 : index
    %73 = vector.load %arg6[%c104_45, %c256_46] : memref<192x512xf32, #tpu.memory_space<vmem>>, vector<8x256xf32>
    %74 = arith.mulf %70, %72 : vector<8x256xf32>
    %75 = arith.addf %63, %74 : vector<8x256xf32>
    %76 = arith.mulf %70, %73 : vector<8x256xf32>
    %77 = arith.addf %65, %76 : vector<8x256xf32>
    %78 = arith.mulf %71, %72 : vector<8x256xf32>
    %79 = arith.addf %67, %78 : vector<8x256xf32>
    %80 = arith.mulf %71, %73 : vector<8x256xf32>
    %81 = arith.addf %69, %80 : vector<8x256xf32>
    %c48 = arith.constant 48 : index
    %c0_47 = arith.constant 0 : index
    %82 = vector.load %arg6[%c48, %c0_47] : memref<192x512xf32, #tpu.memory_space<vmem>>, vector<8x256xf32>
    %c48_48 = arith.constant 48 : index
    %c256_49 = arith.constant 256 : index
    %83 = vector.load %arg6[%c48_48, %c256_49] : memref<192x512xf32, #tpu.memory_space<vmem>>, vector<8x256xf32>
    %c112 = arith.constant 112 : index
    %c0_50 = arith.constant 0 : index
    %84 = vector.load %arg6[%c112, %c0_50] : memref<192x512xf32, #tpu.memory_space<vmem>>, vector<8x256xf32>
    %c112_51 = arith.constant 112 : index
    %c256_52 = arith.constant 256 : index
    %85 = vector.load %arg6[%c112_51, %c256_52] : memref<192x512xf32, #tpu.memory_space<vmem>>, vector<8x256xf32>
    %86 = arith.mulf %82, %84 : vector<8x256xf32>
    %87 = arith.addf %75, %86 : vector<8x256xf32>
    %88 = arith.mulf %82, %85 : vector<8x256xf32>
    %89 = arith.addf %77, %88 : vector<8x256xf32>
    %90 = arith.mulf %83, %84 : vector<8x256xf32>
    %91 = arith.addf %79, %90 : vector<8x256xf32>
    %92 = arith.mulf %83, %85 : vector<8x256xf32>
    %93 = arith.addf %81, %92 : vector<8x256xf32>
    %c56 = arith.constant 56 : index
    %c0_53 = arith.constant 0 : index
    %94 = vector.load %arg6[%c56, %c0_53] : memref<192x512xf32, #tpu.memory_space<vmem>>, vector<8x256xf32>
    %c56_54 = arith.constant 56 : index
    %c256_55 = arith.constant 256 : index
    %95 = vector.load %arg6[%c56_54, %c256_55] : memref<192x512xf32, #tpu.memory_space<vmem>>, vector<8x256xf32>
    %c120 = arith.constant 120 : index
    %c0_56 = arith.constant 0 : index
    %96 = vector.load %arg6[%c120, %c0_56] : memref<192x512xf32, #tpu.memory_space<vmem>>, vector<8x256xf32>
    %c120_57 = arith.constant 120 : index
    %c256_58 = arith.constant 256 : index
    %97 = vector.load %arg6[%c120_57, %c256_58] : memref<192x512xf32, #tpu.memory_space<vmem>>, vector<8x256xf32>
    %98 = arith.mulf %94, %96 : vector<8x256xf32>
    %99 = arith.addf %87, %98 : vector<8x256xf32>
    %100 = arith.mulf %94, %97 : vector<8x256xf32>
    %101 = arith.addf %89, %100 : vector<8x256xf32>
    %102 = arith.mulf %95, %96 : vector<8x256xf32>
    %103 = arith.addf %91, %102 : vector<8x256xf32>
    %104 = arith.mulf %95, %97 : vector<8x256xf32>
    %105 = arith.addf %93, %104 : vector<8x256xf32>
    %106 = arith.maximumf %99, %101 : vector<8x256xf32>
    %107 = arith.subf %99, %106 : vector<8x256xf32>
    %108 = math.exp %107 : vector<8x256xf32>
    %109 = arith.subf %101, %106 : vector<8x256xf32>
    %110 = math.exp %109 : vector<8x256xf32>
    %111 = arith.addf %108, %110 : vector<8x256xf32>
    %cst_59 = arith.constant 1.000000e+00 : f32
    %112 = vector.broadcast %cst_59 : f32 to vector<8x256xf32>
    %113 = arith.divf %112, %111 : vector<8x256xf32>
    %114 = arith.mulf %108, %113 : vector<8x256xf32>
    %115 = arith.mulf %110, %113 : vector<8x256xf32>
    %116 = arith.maximumf %103, %105 : vector<8x256xf32>
    %117 = arith.subf %103, %116 : vector<8x256xf32>
    %118 = math.exp %117 : vector<8x256xf32>
    %119 = arith.subf %105, %116 : vector<8x256xf32>
    %120 = math.exp %119 : vector<8x256xf32>
    %121 = arith.addf %118, %120 : vector<8x256xf32>
    %cst_60 = arith.constant 1.000000e+00 : f32
    %122 = vector.broadcast %cst_60 : f32 to vector<8x256xf32>
    %123 = arith.divf %122, %121 : vector<8x256xf32>
    %124 = arith.mulf %118, %123 : vector<8x256xf32>
    %125 = arith.mulf %120, %123 : vector<8x256xf32>
    %c128 = arith.constant 128 : index
    %c0_61 = arith.constant 0 : index
    %126 = vector.load %arg6[%c128, %c0_61] : memref<192x512xf32, #tpu.memory_space<vmem>>, vector<8x256xf32>
    %c128_62 = arith.constant 128 : index
    %c256_63 = arith.constant 256 : index
    %127 = vector.load %arg6[%c128_62, %c256_63] : memref<192x512xf32, #tpu.memory_space<vmem>>, vector<8x256xf32>
    %128 = arith.mulf %114, %126 : vector<8x256xf32>
    %129 = arith.mulf %115, %127 : vector<8x256xf32>
    %130 = arith.addf %128, %129 : vector<8x256xf32>
    %c0_64 = arith.constant 0 : index
    %c0_65 = arith.constant 0 : index
    %c0_66 = arith.constant 0 : index
    %131 = vector.load %arg7[%c0_64, %c0_65, %c0_66] : memref<2x64x256xf32, #tpu.memory_space<vmem>>, vector<1x8x256xf32>
    %132 = vector.shape_cast %131 : vector<1x8x256xf32> to vector<8x256xf32>
    %133 = arith.addf %132, %130 : vector<8x256xf32>
    %c0_67 = arith.constant 0 : index
    %c0_68 = arith.constant 0 : index
    %c0_69 = arith.constant 0 : index
    %134 = vector.load %arg7[%c0_67, %c0_68, %c0_69] : memref<2x64x256xf32, #tpu.memory_space<vmem>>, vector<1x8x256xf32>
    %135 = vector.shape_cast %134 : vector<1x8x256xf32> to vector<8x256xf32>
    %136 = vector.shape_cast %133 : vector<8x256xf32> to vector<1x8x256xf32>
    tpu.vector_store %arg7[%c0_67, %c0_68, %c0_69], %136 {strides = array<i32>} : memref<2x64x256xf32, #tpu.memory_space<vmem>>, vector<1x8x256xf32>,
    %137 = arith.mulf %124, %126 : vector<8x256xf32>
    %138 = arith.mulf %125, %127 : vector<8x256xf32>
    %139 = arith.addf %137, %138 : vector<8x256xf32>
    %c1_70 = arith.constant 1 : index
    %c0_71 = arith.constant 0 : index
    %c0_72 = arith.constant 0 : index
    %140 = vector.load %arg7[%c1_70, %c0_71, %c0_72] : memref<2x64x256xf32, #tpu.memory_space<vmem>>, vector<1x8x256xf32>
    %141 = vector.shape_cast %140 : vector<1x8x256xf32> to vector<8x256xf32>
    %142 = arith.addf %141, %139 : vector<8x256xf32>
    %c1_73 = arith.constant 1 : index
    %c0_74 = arith.constant 0 : index
    %c0_75 = arith.constant 0 : index
    %143 = vector.load %arg7[%c1_73, %c0_74, %c0_75] : memref<2x64x256xf32, #tpu.memory_space<vmem>>, vector<1x8x256xf32>
    %144 = vector.shape_cast %143 : vector<1x8x256xf32> to vector<8x256xf32>
    %145 = vector.shape_cast %142 : vector<8x256xf32> to vector<1x8x256xf32>
    tpu.vector_store %arg7[%c1_73, %c0_74, %c0_75], %145 {strides = array<i32>} : memref<2x64x256xf32, #tpu.memory_space<vmem>>, vector<1x8x256xf32>,
    %c136 = arith.constant 136 : index
    %c0_76 = arith.constant 0 : index
    %146 = vector.load %arg6[%c136, %c0_76] : memref<192x512xf32, #tpu.memory_space<vmem>>, vector<8x256xf32>
    %c136_77 = arith.constant 136 : index
    %c256_78 = arith.constant 256 : index
    %147 = vector.load %arg6[%c136_77, %c256_78] : memref<192x512xf32, #tpu.memory_space<vmem>>, vector<8x256xf32>
    %148 = arith.mulf %114, %146 : vector<8x256xf32>
    %149 = arith.mulf %115, %147 : vector<8x256xf32>
    %150 = arith.addf %148, %149 : vector<8x256xf32>
    %c0_79 = arith.constant 0 : index
    %c8_80 = arith.constant 8 : index
    %c0_81 = arith.constant 0 : index
    %151 = vector.load %arg7[%c0_79, %c8_80, %c0_81] : memref<2x64x256xf32, #tpu.memory_space<vmem>>, vector<1x8x256xf32>
    %152 = vector.shape_cast %151 : vector<1x8x256xf32> to vector<8x256xf32>
    %153 = arith.addf %152, %150 : vector<8x256xf32>
    %c0_82 = arith.constant 0 : index
    %c8_83 = arith.constant 8 : index
    %c0_84 = arith.constant 0 : index
    %154 = vector.load %arg7[%c0_82, %c8_83, %c0_84] : memref<2x64x256xf32, #tpu.memory_space<vmem>>, vector<1x8x256xf32>
    %155 = vector.shape_cast %154 : vector<1x8x256xf32> to vector<8x256xf32>
    %156 = vector.shape_cast %153 : vector<8x256xf32> to vector<1x8x256xf32>
    tpu.vector_store %arg7[%c0_82, %c8_83, %c0_84], %156 {strides = array<i32>} : memref<2x64x256xf32, #tpu.memory_space<vmem>>, vector<1x8x256xf32>,
    %157 = arith.mulf %124, %146 : vector<8x256xf32>
    %158 = arith.mulf %125, %147 : vector<8x256xf32>
    %159 = arith.addf %157, %158 : vector<8x256xf32>
    %c1_85 = arith.constant 1 : index
    %c8_86 = arith.constant 8 : index
    %c0_87 = arith.constant 0 : index
    %160 = vector.load %arg7[%c1_85, %c8_86, %c0_87] : memref<2x64x256xf32, #tpu.memory_space<vmem>>, vector<1x8x256xf32>
    %161 = vector.shape_cast %160 : vector<1x8x256xf32> to vector<8x256xf32>
    %162 = arith.addf %161, %159 : vector<8x256xf32>
    %c1_88 = arith.constant 1 : index
    %c8_89 = arith.constant 8 : index
    %c0_90 = arith.constant 0 : index
    %163 = vector.load %arg7[%c1_88, %c8_89, %c0_90] : memref<2x64x256xf32, #tpu.memory_space<vmem>>, vector<1x8x256xf32>
    %164 = vector.shape_cast %163 : vector<1x8x256xf32> to vector<8x256xf32>
    %165 = vector.shape_cast %162 : vector<8x256xf32> to vector<1x8x256xf32>
    tpu.vector_store %arg7[%c1_88, %c8_89, %c0_90], %165 {strides = array<i32>} : memref<2x64x256xf32, #tpu.memory_space<vmem>>, vector<1x8x256xf32>,
    %c144 = arith.constant 144 : index
    %c0_91 = arith.constant 0 : index
    %166 = vector.load %arg6[%c144, %c0_91] : memref<192x512xf32, #tpu.memory_space<vmem>>, vector<8x256xf32>
    %c144_92 = arith.constant 144 : index
    %c256_93 = arith.constant 256 : index
    %167 = vector.load %arg6[%c144_92, %c256_93] : memref<192x512xf32, #tpu.memory_space<vmem>>, vector<8x256xf32>
    %168 = arith.mulf %114, %166 : vector<8x256xf32>
    %169 = arith.mulf %115, %167 : vector<8x256xf32>
    %170 = arith.addf %168, %169 : vector<8x256xf32>
    %c0_94 = arith.constant 0 : index
    %c16_95 = arith.constant 16 : index
    %c0_96 = arith.constant 0 : index
    %171 = vector.load %arg7[%c0_94, %c16_95, %c0_96] : memref<2x64x256xf32, #tpu.memory_space<vmem>>, vector<1x8x256xf32>
    %172 = vector.shape_cast %171 : vector<1x8x256xf32> to vector<8x256xf32>
    %173 = arith.addf %172, %170 : vector<8x256xf32>
    %c0_97 = arith.constant 0 : index
    %c16_98 = arith.constant 16 : index
    %c0_99 = arith.constant 0 : index
    %174 = vector.load %arg7[%c0_97, %c16_98, %c0_99] : memref<2x64x256xf32, #tpu.memory_space<vmem>>, vector<1x8x256xf32>
    %175 = vector.shape_cast %174 : vector<1x8x256xf32> to vector<8x256xf32>
    %176 = vector.shape_cast %173 : vector<8x256xf32> to vector<1x8x256xf32>
    tpu.vector_store %arg7[%c0_97, %c16_98, %c0_99], %176 {strides = array<i32>} : memref<2x64x256xf32, #tpu.memory_space<vmem>>, vector<1x8x256xf32>,
    %177 = arith.mulf %124, %166 : vector<8x256xf32>
    %178 = arith.mulf %125, %167 : vector<8x256xf32>
    %179 = arith.addf %177, %178 : vector<8x256xf32>
    %c1_100 = arith.constant 1 : index
    %c16_101 = arith.constant 16 : index
    %c0_102 = arith.constant 0 : index
    %180 = vector.load %arg7[%c1_100, %c16_101, %c0_102] : memref<2x64x256xf32, #tpu.memory_space<vmem>>, vector<1x8x256xf32>
    %181 = vector.shape_cast %180 : vector<1x8x256xf32> to vector<8x256xf32>
    %182 = arith.addf %181, %179 : vector<8x256xf32>
    %c1_103 = arith.constant 1 : index
    %c16_104 = arith.constant 16 : index
    %c0_105 = arith.constant 0 : index
    %183 = vector.load %arg7[%c1_103, %c16_104, %c0_105] : memref<2x64x256xf32, #tpu.memory_space<vmem>>, vector<1x8x256xf32>
    %184 = vector.shape_cast %183 : vector<1x8x256xf32> to vector<8x256xf32>
    %185 = vector.shape_cast %182 : vector<8x256xf32> to vector<1x8x256xf32>
    tpu.vector_store %arg7[%c1_103, %c16_104, %c0_105], %185 {strides = array<i32>} : memref<2x64x256xf32, #tpu.memory_space<vmem>>, vector<1x8x256xf32>,
    %c152 = arith.constant 152 : index
    %c0_106 = arith.constant 0 : index
    %186 = vector.load %arg6[%c152, %c0_106] : memref<192x512xf32, #tpu.memory_space<vmem>>, vector<8x256xf32>
    %c152_107 = arith.constant 152 : index
    %c256_108 = arith.constant 256 : index
    %187 = vector.load %arg6[%c152_107, %c256_108] : memref<192x512xf32, #tpu.memory_space<vmem>>, vector<8x256xf32>
    %188 = arith.mulf %114, %186 : vector<8x256xf32>
    %189 = arith.mulf %115, %187 : vector<8x256xf32>
    %190 = arith.addf %188, %189 : vector<8x256xf32>
    %c0_109 = arith.constant 0 : index
    %c24_110 = arith.constant 24 : index
    %c0_111 = arith.constant 0 : index
    %191 = vector.load %arg7[%c0_109, %c24_110, %c0_111] : memref<2x64x256xf32, #tpu.memory_space<vmem>>, vector<1x8x256xf32>
    %192 = vector.shape_cast %191 : vector<1x8x256xf32> to vector<8x256xf32>
    %193 = arith.addf %192, %190 : vector<8x256xf32>
    %c0_112 = arith.constant 0 : index
    %c24_113 = arith.constant 24 : index
    %c0_114 = arith.constant 0 : index
    %194 = vector.load %arg7[%c0_112, %c24_113, %c0_114] : memref<2x64x256xf32, #tpu.memory_space<vmem>>, vector<1x8x256xf32>
    %195 = vector.shape_cast %194 : vector<1x8x256xf32> to vector<8x256xf32>
    %196 = vector.shape_cast %193 : vector<8x256xf32> to vector<1x8x256xf32>
    tpu.vector_store %arg7[%c0_112, %c24_113, %c0_114], %196 {strides = array<i32>} : memref<2x64x256xf32, #tpu.memory_space<vmem>>, vector<1x8x256xf32>,
    %197 = arith.mulf %124, %186 : vector<8x256xf32>
    %198 = arith.mulf %125, %187 : vector<8x256xf32>
    %199 = arith.addf %197, %198 : vector<8x256xf32>
    %c1_115 = arith.constant 1 : index
    %c24_116 = arith.constant 24 : index
    %c0_117 = arith.constant 0 : index
    %200 = vector.load %arg7[%c1_115, %c24_116, %c0_117] : memref<2x64x256xf32, #tpu.memory_space<vmem>>, vector<1x8x256xf32>
    %201 = vector.shape_cast %200 : vector<1x8x256xf32> to vector<8x256xf32>
    %202 = arith.addf %201, %199 : vector<8x256xf32>
    %c1_118 = arith.constant 1 : index
    %c24_119 = arith.constant 24 : index
    %c0_120 = arith.constant 0 : index
    %203 = vector.load %arg7[%c1_118, %c24_119, %c0_120] : memref<2x64x256xf32, #tpu.memory_space<vmem>>, vector<1x8x256xf32>
    %204 = vector.shape_cast %203 : vector<1x8x256xf32> to vector<8x256xf32>
    %205 = vector.shape_cast %202 : vector<8x256xf32> to vector<1x8x256xf32>
    tpu.vector_store %arg7[%c1_118, %c24_119, %c0_120], %205 {strides = array<i32>} : memref<2x64x256xf32, #tpu.memory_space<vmem>>, vector<1x8x256xf32>,
    %c160 = arith.constant 160 : index
    %c0_121 = arith.constant 0 : index
    %206 = vector.load %arg6[%c160, %c0_121] : memref<192x512xf32, #tpu.memory_space<vmem>>, vector<8x256xf32>
    %c160_122 = arith.constant 160 : index
    %c256_123 = arith.constant 256 : index
    %207 = vector.load %arg6[%c160_122, %c256_123] : memref<192x512xf32, #tpu.memory_space<vmem>>, vector<8x256xf32>
    %208 = arith.mulf %114, %206 : vector<8x256xf32>
    %209 = arith.mulf %115, %207 : vector<8x256xf32>
    %210 = arith.addf %208, %209 : vector<8x256xf32>
    %c0_124 = arith.constant 0 : index
    %c32_125 = arith.constant 32 : index
    %c0_126 = arith.constant 0 : index
    %211 = vector.load %arg7[%c0_124, %c32_125, %c0_126] : memref<2x64x256xf32, #tpu.memory_space<vmem>>, vector<1x8x256xf32>
    %212 = vector.shape_cast %211 : vector<1x8x256xf32> to vector<8x256xf32>
    %213 = arith.addf %212, %210 : vector<8x256xf32>
    %c0_127 = arith.constant 0 : index
    %c32_128 = arith.constant 32 : index
    %c0_129 = arith.constant 0 : index
    %214 = vector.load %arg7[%c0_127, %c32_128, %c0_129] : memref<2x64x256xf32, #tpu.memory_space<vmem>>, vector<1x8x256xf32>
    %215 = vector.shape_cast %214 : vector<1x8x256xf32> to vector<8x256xf32>
    %216 = vector.shape_cast %213 : vector<8x256xf32> to vector<1x8x256xf32>
    tpu.vector_store %arg7[%c0_127, %c32_128, %c0_129], %216 {strides = array<i32>} : memref<2x64x256xf32, #tpu.memory_space<vmem>>, vector<1x8x256xf32>,
    %217 = arith.mulf %124, %206 : vector<8x256xf32>
    %218 = arith.mulf %125, %207 : vector<8x256xf32>
    %219 = arith.addf %217, %218 : vector<8x256xf32>
    %c1_130 = arith.constant 1 : index
    %c32_131 = arith.constant 32 : index
    %c0_132 = arith.constant 0 : index
    %220 = vector.load %arg7[%c1_130, %c32_131, %c0_132] : memref<2x64x256xf32, #tpu.memory_space<vmem>>, vector<1x8x256xf32>
    %221 = vector.shape_cast %220 : vector<1x8x256xf32> to vector<8x256xf32>
    %222 = arith.addf %221, %219 : vector<8x256xf32>
    %c1_133 = arith.constant 1 : index
    %c32_134 = arith.constant 32 : index
    %c0_135 = arith.constant 0 : index
    %223 = vector.load %arg7[%c1_133, %c32_134, %c0_135] : memref<2x64x256xf32, #tpu.memory_space<vmem>>, vector<1x8x256xf32>
    %224 = vector.shape_cast %223 : vector<1x8x256xf32> to vector<8x256xf32>
    %225 = vector.shape_cast %222 : vector<8x256xf32> to vector<1x8x256xf32>
    tpu.vector_store %arg7[%c1_133, %c32_134, %c0_135], %225 {strides = array<i32>} : memref<2x64x256xf32, #tpu.memory_space<vmem>>, vector<1x8x256xf32>,
    %c168 = arith.constant 168 : index
    %c0_136 = arith.constant 0 : index
    %226 = vector.load %arg6[%c168, %c0_136] : memref<192x512xf32, #tpu.memory_space<vmem>>, vector<8x256xf32>
    %c168_137 = arith.constant 168 : index
    %c256_138 = arith.constant 256 : index
    %227 = vector.load %arg6[%c168_137, %c256_138] : memref<192x512xf32, #tpu.memory_space<vmem>>, vector<8x256xf32>
    %228 = arith.mulf %114, %226 : vector<8x256xf32>
    %229 = arith.mulf %115, %227 : vector<8x256xf32>
    %230 = arith.addf %228, %229 : vector<8x256xf32>
    %c0_139 = arith.constant 0 : index
    %c40_140 = arith.constant 40 : index
    %c0_141 = arith.constant 0 : index
    %231 = vector.load %arg7[%c0_139, %c40_140, %c0_141] : memref<2x64x256xf32, #tpu.memory_space<vmem>>, vector<1x8x256xf32>
    %232 = vector.shape_cast %231 : vector<1x8x256xf32> to vector<8x256xf32>
    %233 = arith.addf %232, %230 : vector<8x256xf32>
    %c0_142 = arith.constant 0 : index
    %c40_143 = arith.constant 40 : index
    %c0_144 = arith.constant 0 : index
    %234 = vector.load %arg7[%c0_142, %c40_143, %c0_144] : memref<2x64x256xf32, #tpu.memory_space<vmem>>, vector<1x8x256xf32>
    %235 = vector.shape_cast %234 : vector<1x8x256xf32> to vector<8x256xf32>
    %236 = vector.shape_cast %233 : vector<8x256xf32> to vector<1x8x256xf32>
    tpu.vector_store %arg7[%c0_142, %c40_143, %c0_144], %236 {strides = array<i32>} : memref<2x64x256xf32, #tpu.memory_space<vmem>>, vector<1x8x256xf32>,
    %237 = arith.mulf %124, %226 : vector<8x256xf32>
    %238 = arith.mulf %125, %227 : vector<8x256xf32>
    %239 = arith.addf %237, %238 : vector<8x256xf32>
    %c1_145 = arith.constant 1 : index
    %c40_146 = arith.constant 40 : index
    %c0_147 = arith.constant 0 : index
    %240 = vector.load %arg7[%c1_145, %c40_146, %c0_147] : memref<2x64x256xf32, #tpu.memory_space<vmem>>, vector<1x8x256xf32>
    %241 = vector.shape_cast %240 : vector<1x8x256xf32> to vector<8x256xf32>
    %242 = arith.addf %241, %239 : vector<8x256xf32>
    %c1_148 = arith.constant 1 : index
    %c40_149 = arith.constant 40 : index
    %c0_150 = arith.constant 0 : index
    %243 = vector.load %arg7[%c1_148, %c40_149, %c0_150] : memref<2x64x256xf32, #tpu.memory_space<vmem>>, vector<1x8x256xf32>
    %244 = vector.shape_cast %243 : vector<1x8x256xf32> to vector<8x256xf32>
    %245 = vector.shape_cast %242 : vector<8x256xf32> to vector<1x8x256xf32>
    tpu.vector_store %arg7[%c1_148, %c40_149, %c0_150], %245 {strides = array<i32>} : memref<2x64x256xf32, #tpu.memory_space<vmem>>, vector<1x8x256xf32>,
    %c176 = arith.constant 176 : index
    %c0_151 = arith.constant 0 : index
    %246 = vector.load %arg6[%c176, %c0_151] : memref<192x512xf32, #tpu.memory_space<vmem>>, vector<8x256xf32>
    %c176_152 = arith.constant 176 : index
    %c256_153 = arith.constant 256 : index
    %247 = vector.load %arg6[%c176_152, %c256_153] : memref<192x512xf32, #tpu.memory_space<vmem>>, vector<8x256xf32>
    %248 = arith.mulf %114, %246 : vector<8x256xf32>
    %249 = arith.mulf %115, %247 : vector<8x256xf32>
    %250 = arith.addf %248, %249 : vector<8x256xf32>
    %c0_154 = arith.constant 0 : index
    %c48_155 = arith.constant 48 : index
    %c0_156 = arith.constant 0 : index
    %251 = vector.load %arg7[%c0_154, %c48_155, %c0_156] : memref<2x64x256xf32, #tpu.memory_space<vmem>>, vector<1x8x256xf32>
    %252 = vector.shape_cast %251 : vector<1x8x256xf32> to vector<8x256xf32>
    %253 = arith.addf %252, %250 : vector<8x256xf32>
    %c0_157 = arith.constant 0 : index
    %c48_158 = arith.constant 48 : index
    %c0_159 = arith.constant 0 : index
    %254 = vector.load %arg7[%c0_157, %c48_158, %c0_159] : memref<2x64x256xf32, #tpu.memory_space<vmem>>, vector<1x8x256xf32>
    %255 = vector.shape_cast %254 : vector<1x8x256xf32> to vector<8x256xf32>
    %256 = vector.shape_cast %253 : vector<8x256xf32> to vector<1x8x256xf32>
    tpu.vector_store %arg7[%c0_157, %c48_158, %c0_159], %256 {strides = array<i32>} : memref<2x64x256xf32, #tpu.memory_space<vmem>>, vector<1x8x256xf32>,
    %257 = arith.mulf %124, %246 : vector<8x256xf32>
    %258 = arith.mulf %125, %247 : vector<8x256xf32>
    %259 = arith.addf %257, %258 : vector<8x256xf32>
    %c1_160 = arith.constant 1 : index
    %c48_161 = arith.constant 48 : index
    %c0_162 = arith.constant 0 : index
    %260 = vector.load %arg7[%c1_160, %c48_161, %c0_162] : memref<2x64x256xf32, #tpu.memory_space<vmem>>, vector<1x8x256xf32>
    %261 = vector.shape_cast %260 : vector<1x8x256xf32> to vector<8x256xf32>
    %262 = arith.addf %261, %259 : vector<8x256xf32>
    %c1_163 = arith.constant 1 : index
    %c48_164 = arith.constant 48 : index
    %c0_165 = arith.constant 0 : index
    %263 = vector.load %arg7[%c1_163, %c48_164, %c0_165] : memref<2x64x256xf32, #tpu.memory_space<vmem>>, vector<1x8x256xf32>
    %264 = vector.shape_cast %263 : vector<1x8x256xf32> to vector<8x256xf32>
    %265 = vector.shape_cast %262 : vector<8x256xf32> to vector<1x8x256xf32>
    tpu.vector_store %arg7[%c1_163, %c48_164, %c0_165], %265 {strides = array<i32>} : memref<2x64x256xf32, #tpu.memory_space<vmem>>, vector<1x8x256xf32>,
    %c184 = arith.constant 184 : index
    %c0_166 = arith.constant 0 : index
    %266 = vector.load %arg6[%c184, %c0_166] : memref<192x512xf32, #tpu.memory_space<vmem>>, vector<8x256xf32>
    %c184_167 = arith.constant 184 : index
    %c256_168 = arith.constant 256 : index
    %267 = vector.load %arg6[%c184_167, %c256_168] : memref<192x512xf32, #tpu.memory_space<vmem>>, vector<8x256xf32>
    %268 = arith.mulf %114, %266 : vector<8x256xf32>
    %269 = arith.mulf %115, %267 : vector<8x256xf32>
    %270 = arith.addf %268, %269 : vector<8x256xf32>
    %c0_169 = arith.constant 0 : index
    %c56_170 = arith.constant 56 : index
    %c0_171 = arith.constant 0 : index
    %271 = vector.load %arg7[%c0_169, %c56_170, %c0_171] : memref<2x64x256xf32, #tpu.memory_space<vmem>>, vector<1x8x256xf32>
    %272 = vector.shape_cast %271 : vector<1x8x256xf32> to vector<8x256xf32>
    %273 = arith.addf %272, %270 : vector<8x256xf32>
    %c0_172 = arith.constant 0 : index
    %c56_173 = arith.constant 56 : index
    %c0_174 = arith.constant 0 : index
    %274 = vector.load %arg7[%c0_172, %c56_173, %c0_174] : memref<2x64x256xf32, #tpu.memory_space<vmem>>, vector<1x8x256xf32>
    %275 = vector.shape_cast %274 : vector<1x8x256xf32> to vector<8x256xf32>
    %276 = vector.shape_cast %273 : vector<8x256xf32> to vector<1x8x256xf32>
    tpu.vector_store %arg7[%c0_172, %c56_173, %c0_174], %276 {strides = array<i32>} : memref<2x64x256xf32, #tpu.memory_space<vmem>>, vector<1x8x256xf32>,
    %277 = arith.mulf %124, %266 : vector<8x256xf32>
    %278 = arith.mulf %125, %267 : vector<8x256xf32>
    %279 = arith.addf %277, %278 : vector<8x256xf32>
    %c1_175 = arith.constant 1 : index
    %c56_176 = arith.constant 56 : index
    %c0_177 = arith.constant 0 : index
    %280 = vector.load %arg7[%c1_175, %c56_176, %c0_177] : memref<2x64x256xf32, #tpu.memory_space<vmem>>, vector<1x8x256xf32>
    %281 = vector.shape_cast %280 : vector<1x8x256xf32> to vector<8x256xf32>
    %282 = arith.addf %281, %279 : vector<8x256xf32>
    %c1_178 = arith.constant 1 : index
    %c56_179 = arith.constant 56 : index
    %c0_180 = arith.constant 0 : index
    %283 = vector.load %arg7[%c1_178, %c56_179, %c0_180] : memref<2x64x256xf32, #tpu.memory_space<vmem>>, vector<1x8x256xf32>
    %284 = vector.shape_cast %283 : vector<1x8x256xf32> to vector<8x256xf32>
    %285 = vector.shape_cast %282 : vector<8x256xf32> to vector<1x8x256xf32>
    tpu.vector_store %arg7[%c1_178, %c56_179, %c0_180], %285 {strides = array<i32>} : memref<2x64x256xf32, #tpu.memory_space<vmem>>, vector<1x8x256xf32>,
    %c0_i32_181 = arith.constant 0 : i32
    %286 = arith.cmpi eq, %arg1, %c0_i32_181 : i32
    %287 = arith.extui %286 : i1 to i32
    %c0_i32_182 = arith.constant 0 : i32
    %288 = arith.cmpi ne, %287, %c0_i32_182 : i32
    scf.if %288 {
      %c0_183 = arith.constant 0 : index
      %c0_184 = arith.constant 0 : index
      %c0_185 = arith.constant 0 : index
      %289 = vector.load %arg7[%c0_183, %c0_184, %c0_185] : memref<2x64x256xf32, #tpu.memory_space<vmem>>, vector<2x64x256xf32>
      %cst_186 = arith.constant dense<0.000000e+00> : vector<2x64xf32>
      %290 = vector.multi_reduction <add>, %289, %cst_186 [2] : vector<2x64x256xf32> to vector<2x64xf32>
      %c0_187 = arith.constant 0 : index
      %c0_188 = arith.constant 0 : index
      %c0_189 = arith.constant 0 : index
      %291 = vector.load %arg5[%c0_187, %c0_188, %c0_189] : memref<1x2x64xf32, #tpu.memory_space<vmem>>, vector<1x2x64xf32>
      %292 = vector.shape_cast %291 : vector<1x2x64xf32> to vector<2x64xf32>
      %293 = vector.shape_cast %290 : vector<2x64xf32> to vector<1x2x64xf32>
      tpu.vector_store %arg5[%c0_187, %c0_188, %c0_189], %293 {strides = array<i32>} : memref<1x2x64xf32, #tpu.memory_space<vmem>>, vector<1x2x64xf32>,
    } else {
    }
    return
  }
  func.func @transform_0(%arg0: i32, %arg1: i32) -> (i32, i32, i32) {
    %c1_i32 = arith.constant 1 : i32
    %0 = arith.muli %arg0, %c1_i32 : i32
    %1 = arith.addi %0, %arg1 : i32
    %c0_i32 = arith.constant 0 : i32
    %c0_i32_0 = arith.constant 0 : i32
    %c0_i32_1 = arith.constant 0 : i32
    return %c0_i32, %c0_i32_0, %1 : i32, i32, i32
  }
  func.func @transform_1(%arg0: i32, %arg1: i32) -> (i32, i32) {
    %c0_i32 = arith.constant 0 : i32
    %c0_i32_0 = arith.constant 0 : i32
    %c0_i32_1 = arith.constant 0 : i32
    return %c0_i32, %c0_i32_0 : i32, i32
  }
  func.func @transform_2(%arg0: i32, %arg1: i32) -> (i32, i32) {
    %c0_i32 = arith.constant 0 : i32
    %c0_i32_0 = arith.constant 0 : i32
    %c0_i32_1 = arith.constant 0 : i32
    return %c0_i32, %c0_i32_0 : i32, i32
  }
  func.func @transform_3(%arg0: i32, %arg1: i32) -> (i32, i32, i32) {
    %c0_i32 = arith.constant 0 : i32
    %c0_i32_0 = arith.constant 0 : i32
    %c0_i32_1 = arith.constant 0 : i32
    return %arg0, %c0_i32, %c0_i32_0 : i32, i32, i32
  }
}

</mosaic_0001>

<llo_original>
// kernel: tpu_custom_call.1
$region0: #{tpu_custom_call.1}
  #allocation0 [shape = 'u32[]', space=smem, size = 0x4, offset = 0x4, fixed_abs, tag = 'smem constant byte address 0x4 - core index']
  #allocation1 [shape = 'u32[144,128]{1,0:T(1,128)}', space=vmem, size = 0x12000, scoped, tag = 'internal scratch']
  #allocation2 [shape = 'f32[192,512]{1,0:T(8,128)}', space=vmem, size = 0x60000, scoped, tag = 'scratch operand']
  #allocation3 [shape = 'f32[2,64,256]{2,1,0:T(8,128)}', space=vmem, size = 0x20000, scoped, tag = 'scratch operand']
  %s0 = inlined_call_operand.vmem [shape: f32[2,64,256], index: 0, kind: input, shape index: {}]
  %s1 = inlined_call_operand.vmem [shape: f32[192,64], index: 1, kind: input, shape index: {}]
  %s2 = inlined_call_operand.vmem [shape: f32[192,1], index: 2, kind: input, shape index: {}]
  %s3 = inlined_call_operand.hbm [shape: f32[1,2,64], index: 3, kind: output, shape index: {}]
  %s4 = sld [smem:[#allocation0]]
  $region30: #{tpu_custom_call.1} parent=0
    _
  %s6 = ssub.s32 1, %s4
  %s7 = scalar_select 0, %s6, %s4
  $region1: #{tpu_custom_call.1} parent=0
    #allocation4 [shape = 'u8[1024]{0}', space=vmem, size = 0x400, scoped, tag = 'output window, operand 0, single buffered']
    #allocation5 [shape = 's32[1]{0}', space=sflag, size = 0x4, scoped, tag = 'scoped memory for tpu_custom_call.1']
    %8 = vsyncpa [#allocation5], 0
    // Predicated region
    $region2: #{tpu_custom_call.1} parent=1 // pred_check
      _
    $region3: #{tpu_custom_call.1} parent=1 // pred_check_branch
      %10 = sbr.rel (0) target = $region5
    $region4: #{tpu_custom_call.1} parent=1 // pred_region
      %s11 = sadd.s32 0, 0
      %s12 = smul.u32 2, %s11
      %p13 = scmp.lt.s32.totalorder %s12, 1
      %s14 = scalar_select %p13, %s12, 1
      %s15 = smul.addr %s14, 8
      %s16 = scalar_lea.vmem %s0, %s15
      %s17 = sadd.s32 0, 0
      %s18 = smul.u32 2, %s17
    $region5: #{tpu_custom_call.1} parent=1 // pred_fallthru
      _
    // Predicated region
    $region6: #{tpu_custom_call.1} parent=1 // pred_check
      _
    $region7: #{tpu_custom_call.1} parent=1 // pred_check_branch
      %20 = sbr.rel (0) target = $region9
    $region8: #{tpu_custom_call.1} parent=1 // pred_region
      _
    $region9: #{tpu_custom_call.1} parent=1 // pred_fallthru
      _
    // Predicated region
    $region10: #{tpu_custom_call.1} parent=1 // pred_check
      _
    $region11: #{tpu_custom_call.1} parent=1 // pred_check_branch
      %22 = sbr.rel (0) target = $region13
    $region12: #{tpu_custom_call.1} parent=1 // pred_region
      _
    $region13: #{tpu_custom_call.1} parent=1 // pred_fallthru
      _
    %s23 = sadd.s32 0, 0
    %s24 = smul.u32 2, %s23
    %p25 = scmp.lt.s32.totalorder %s24, 1
    %s26 = scalar_select %p25, %s24, 1
    %s27 = smul.addr %s26, 8
    %s28 = scalar_lea.vmem %s0, %s27
    %s29 = sadd.s32 0, 0
    %s30 = smul.u32 2, %s29
    %p31 = scmp.lt.s32.totalorder %s30, 1
    %s32 = scalar_select %p31, %s30, 1
    %s33 = smul.addr %s32, 8
    %s34 = scalar_lea.vmem %s0, %s33
    %s35 = sadd.s32 0, 0
    %s36 = smul.u32 2, %s35
    %p37 = scmp.eq.s32.totalorder 0, 0
    // Predicated region
    $region14: #{tpu_custom_call.1} parent=1 // pred_check
      %p38 = pneg %p37
    $region15: #{tpu_custom_call.1} parent=1 // pred_check_branch
      %40 = sbr.rel (%p38) target = $region17
    $region16: #{tpu_custom_call.1} parent=1 // pred_region
      %41 = vst [vmem:[#allocation3] sm:$0xff] 0.0
      %42 = vst [vmem:[#allocation3 + $0x8] sm:$0xff] 0.0
      %43 = vst [vmem:[#allocation3 + $0x10] sm:$0xff] 0.0
      %44 = vst [vmem:[#allocation3 + $0x18] sm:$0xff] 0.0
      %45 = vst [vmem:[#allocation3 + $0x20] sm:$0xff] 0.0
      %46 = vst [vmem:[#allocation3 + $0x28] sm:$0xff] 0.0
      %47 = vst [vmem:[#allocation3 + $0x30] sm:$0xff] 0.0
      %48 = vst [vmem:[#allocation3 + $0x38] sm:$0xff] 0.0
      %49 = vst [vmem:[#allocation3 + $0x40] sm:$0xff] 0.0
      %50 = vst [vmem:[#allocation3 + $0x48] sm:$0xff] 0.0
      %51 = vst [vmem:[#allocation3 + $0x50] sm:$0xff] 0.0
      %52 = vst [vmem:[#allocation3 + $0x58] sm:$0xff] 0.0
      %53 = vst [vmem:[#allocation3 + $0x60] sm:$0xff] 0.0
      %54 = vst [vmem:[#allocation3 + $0x68] sm:$0xff] 0.0
      %55 = vst [vmem:[#allocation3 + $0x70] sm:$0xff] 0.0
      %56 = vst [vmem:[#allocation3 + $0x78] sm:$0xff] 0.0
      %57 = vst [vmem:[#allocation3 + $0x80] sm:$0xff] 0.0
      %58 = vst [vmem:[#allocation3 + $0x88] sm:$0xff] 0.0
      %59 = vst [vmem:[#allocation3 + $0x90] sm:$0xff] 0.0
      %60 = vst [vmem:[#allocation3 + $0x98] sm:$0xff] 0.0
      %61 = vst [vmem:[#allocation3 + $0xa0] sm:$0xff] 0.0
      %62 = vst [vmem:[#allocation3 + $0xa8] sm:$0xff] 0.0
      %63 = vst [vmem:[#allocation3 + $0xb0] sm:$0xff] 0.0
      %64 = vst [vmem:[#allocation3 + $0xb8] sm:$0xff] 0.0
      %65 = vst [vmem:[#allocation3 + $0xc0] sm:$0xff] 0.0
      %66 = vst [vmem:[#allocation3 + $0xc8] sm:$0xff] 0.0
      %67 = vst [vmem:[#allocation3 + $0xd0] sm:$0xff] 0.0
      %68 = vst [vmem:[#allocation3 + $0xd8] sm:$0xff] 0.0
      %69 = vst [vmem:[#allocation3 + $0xe0] sm:$0xff] 0.0
      %70 = vst [vmem:[#allocation3 + $0xe8] sm:$0xff] 0.0
      %71 = vst [vmem:[#allocation3 + $0xf0] sm:$0xff] 0.0
      %72 = vst [vmem:[#allocation3 + $0xf8] sm:$0xff] 0.0
    $region17: #{tpu_custom_call.1} parent=1 // pred_fallthru
      _
    %v73 = vld [vmem:[%s34] sm:$0xff]
    %v74 = vld [vmem:[%s34 + $0x8] sm:$0xff]
    %v75 = vld [vmem:[%s34 + $0x10] sm:$0xff]
    %v76 = vld [vmem:[%s34 + $0x18] sm:$0xff]
    %v77 = vld [vmem:[%s34 + $0x20] sm:$0xff]
    %v78 = vld [vmem:[%s34 + $0x28] sm:$0xff]
    %v79 = vld [vmem:[%s34 + $0x30] sm:$0xff]
    %v80 = vld [vmem:[%s34 + $0x38] sm:$0xff]
    %v81 = vld [vmem:[%s34 + $0x40] sm:$0xff]
    %v82 = vld [vmem:[%s34 + $0x48] sm:$0xff]
    %v83 = vld [vmem:[%s34 + $0x50] sm:$0xff]
    %v84 = vld [vmem:[%s34 + $0x58] sm:$0xff]
    %v85 = vld [vmem:[%s34 + $0x60] sm:$0xff]
    %v86 = vld [vmem:[%s34 + $0x68] sm:$0xff]
    %v87 = vld [vmem:[%s34 + $0x70] sm:$0xff]
    %v88 = vld [vmem:[%s34 + $0x78] sm:$0xff]
    %s89 = scalar_lea.vmem %s34, 128
    %v90 = vld [vmem:[%s89] sm:$0xff]
    %v91 = vld [vmem:[%s89 + $0x8] sm:$0xff]
    %v92 = vld [vmem:[%s89 + $0x10] sm:$0xff]
    %v93 = vld [vmem:[%s89 + $0x18] sm:$0xff]
    %v94 = vld [vmem:[%s89 + $0x20] sm:$0xff]
    %v95 = vld [vmem:[%s89 + $0x28] sm:$0xff]
    %v96 = vld [vmem:[%s89 + $0x30] sm:$0xff]
    %v97 = vld [vmem:[%s89 + $0x38] sm:$0xff]
    %v98 = vld [vmem:[%s89 + $0x40] sm:$0xff]
    %v99 = vld [vmem:[%s89 + $0x48] sm:$0xff]
    %v100 = vld [vmem:[%s89 + $0x50] sm:$0xff]
    %v101 = vld [vmem:[%s89 + $0x58] sm:$0xff]
    %v102 = vld [vmem:[%s89 + $0x60] sm:$0xff]
    %v103 = vld [vmem:[%s89 + $0x68] sm:$0xff]
    %v104 = vld [vmem:[%s89 + $0x70] sm:$0xff]
    %v105 = vld [vmem:[%s89 + $0x78] sm:$0xff]
    %v106 = vld [vmem:[%s1] sm:$0xff]
    %v107 = vld [vmem:[%s1 + $0x8] sm:$0xff]
    %v108 = vld [vmem:[%s1 + $0x10] sm:$0xff]
    %v109 = vld [vmem:[%s1 + $0x18] sm:$0xff]
    %v110 = vld [vmem:[%s1 + $0x20] sm:$0xff]
    %v111 = vld [vmem:[%s1 + $0x28] sm:$0xff]
    %v112 = vld [vmem:[%s1 + $0x30] sm:$0xff]
    %v113 = vld [vmem:[%s1 + $0x38] sm:$0xff]
    %v114 = vld [vmem:[%s1 + $0x40] sm:$0xff]
    %v115 = vld [vmem:[%s1 + $0x48] sm:$0xff]
    %v116 = vld [vmem:[%s1 + $0x50] sm:$0xff]
    %v117 = vld [vmem:[%s1 + $0x58] sm:$0xff]
    %v118 = vld [vmem:[%s1 + $0x60] sm:$0xff]
    %v119 = vld [vmem:[%s1 + $0x68] sm:$0xff]
    %v120 = vld [vmem:[%s1 + $0x70] sm:$0xff]
    %v121 = vld [vmem:[%s1 + $0x78] sm:$0xff]
    %v122 = vld [vmem:[%s1 + $0x80] sm:$0xff]
    %v123 = vld [vmem:[%s1 + $0x88] sm:$0xff]
    %v124 = vld [vmem:[%s1 + $0x90] sm:$0xff]
    %v125 = vld [vmem:[%s1 + $0x98] sm:$0xff]
    %v126 = vld [vmem:[%s1 + $0xa0] sm:$0xff]
    %v127 = vld [vmem:[%s1 + $0xa8] sm:$0xff]
    %v128 = vld [vmem:[%s1 + $0xb0] sm:$0xff]
    %v129 = vld [vmem:[%s1 + $0xb8] sm:$0xff]
    %v130 = vld [vmem:[%s2] sm:$0xff]
    %v131 = vld [vmem:[%s2 + $0x8] sm:$0xff]
    %v132 = vld [vmem:[%s2 + $0x10] sm:$0xff]
    %v133 = vld [vmem:[%s2 + $0x18] sm:$0xff]
    %v134 = vld [vmem:[%s2 + $0x20] sm:$0xff]
    %v135 = vld [vmem:[%s2 + $0x28] sm:$0xff]
    %v136 = vld [vmem:[%s2 + $0x30] sm:$0xff]
    %v137 = vld [vmem:[%s2 + $0x38] sm:$0xff]
    %v138 = vld [vmem:[%s2 + $0x40] sm:$0xff]
    %v139 = vld [vmem:[%s2 + $0x48] sm:$0xff]
    %v140 = vld [vmem:[%s2 + $0x50] sm:$0xff]
    %v141 = vld [vmem:[%s2 + $0x58] sm:$0xff]
    %v142 = vld [vmem:[%s2 + $0x60] sm:$0xff]
    %v143 = vld [vmem:[%s2 + $0x68] sm:$0xff]
    %v144 = vld [vmem:[%s2 + $0x70] sm:$0xff]
    %v145 = vld [vmem:[%s2 + $0x78] sm:$0xff]
    %v146 = vld [vmem:[%s2 + $0x80] sm:$0xff]
    %v147 = vld [vmem:[%s2 + $0x88] sm:$0xff]
    %v148 = vld [vmem:[%s2 + $0x90] sm:$0xff]
    %v149 = vld [vmem:[%s2 + $0x98] sm:$0xff]
    %v150 = vld [vmem:[%s2 + $0xa0] sm:$0xff]
    %v151 = vld [vmem:[%s2 + $0xa8] sm:$0xff]
    %v152 = vld [vmem:[%s2 + $0xb0] sm:$0xff]
    %v153 = vld [vmem:[%s2 + $0xb8] sm:$0xff]
    %155 = vset.pattern.permute.xlu0 0
    %156 = vperm.xlu0 %155, %v130
    %v157 = vpop.permute.xlu0 %156
    %160 = vset.pattern.permute.xlu0 0
    %161 = vperm.xlu0 %160, %v131
    %v162 = vpop.permute.xlu0 %161
    %165 = vset.pattern.permute.xlu0 0
    %166 = vperm.xlu0 %165, %v132
    %v167 = vpop.permute.xlu0 %166
    %170 = vset.pattern.permute.xlu0 0
    %171 = vperm.xlu0 %170, %v133
    %v172 = vpop.permute.xlu0 %171
    %175 = vset.pattern.permute.xlu0 0
    %176 = vperm.xlu0 %175, %v134
    %v177 = vpop.permute.xlu0 %176
    %180 = vset.pattern.permute.xlu0 0
    %181 = vperm.xlu0 %180, %v135
    %v182 = vpop.permute.xlu0 %181
    %185 = vset.pattern.permute.xlu0 0
    %186 = vperm.xlu0 %185, %v136
    %v187 = vpop.permute.xlu0 %186
    %190 = vset.pattern.permute.xlu0 0
    %191 = vperm.xlu0 %190, %v137
    %v192 = vpop.permute.xlu0 %191
    %195 = vset.pattern.permute.xlu0 0
    %196 = vperm.xlu0 %195, %v138
    %v197 = vpop.permute.xlu0 %196
    %200 = vset.pattern.permute.xlu0 0
    %201 = vperm.xlu0 %200, %v139
    %v202 = vpop.permute.xlu0 %201
    %205 = vset.pattern.permute.xlu0 0
    %206 = vperm.xlu0 %205, %v140
    %v207 = vpop.permute.xlu0 %206
    %210 = vset.pattern.permute.xlu0 0
    %211 = vperm.xlu0 %210, %v141
    %v212 = vpop.permute.xlu0 %211
    %215 = vset.pattern.permute.xlu0 0
    %216 = vperm.xlu0 %215, %v142
    %v217 = vpop.permute.xlu0 %216
    %220 = vset.pattern.permute.xlu0 0
    %221 = vperm.xlu0 %220, %v143
    %v222 = vpop.permute.xlu0 %221
    %225 = vset.pattern.permute.xlu0 0
    %226 = vperm.xlu0 %225, %v144
    %v227 = vpop.permute.xlu0 %226
    %230 = vset.pattern.permute.xlu0 0
    %231 = vperm.xlu0 %230, %v145
    %v232 = vpop.permute.xlu0 %231
    %235 = vset.pattern.permute.xlu0 0
    %236 = vperm.xlu0 %235, %v146
    %v237 = vpop.permute.xlu0 %236
    %240 = vset.pattern.permute.xlu0 0
    %241 = vperm.xlu0 %240, %v147
    %v242 = vpop.permute.xlu0 %241
    %245 = vset.pattern.permute.xlu0 0
    %246 = vperm.xlu0 %245, %v148
    %v247 = vpop.permute.xlu0 %246
    %250 = vset.pattern.permute.xlu0 0
    %251 = vperm.xlu0 %250, %v149
    %v252 = vpop.permute.xlu0 %251
    %255 = vset.pattern.permute.xlu0 0
    %256 = vperm.xlu0 %255, %v150
    %v257 = vpop.permute.xlu0 %256
    %260 = vset.pattern.permute.xlu0 0
    %261 = vperm.xlu0 %260, %v151
    %v262 = vpop.permute.xlu0 %261
    %265 = vset.pattern.permute.xlu0 0
    %266 = vperm.xlu0 %265, %v152
    %v267 = vpop.permute.xlu0 %266
    %270 = vset.pattern.permute.xlu0 0
    %271 = vperm.xlu0 %270, %v153
    %v272 = vpop.permute.xlu0 %271
    %vm274 = vcmask 523264
    %v276 = vsel %vm274, %v106, 0
    %v279 = vsel %vm274, %v107, 0
    %v282 = vsel %vm274, %v108, 0
    %v285 = vsel %vm274, %v109, 0
    %v288 = vsel %vm274, %v110, 0
    %v291 = vsel %vm274, %v111, 0
    %v294 = vsel %vm274, %v112, 0
    %v297 = vsel %vm274, %v113, 0
    %v300 = vsel %vm274, %v114, 0
    %v303 = vsel %vm274, %v115, 0
    %v306 = vsel %vm274, %v116, 0
    %v309 = vsel %vm274, %v117, 0
    %v312 = vsel %vm274, %v118, 0
    %v315 = vsel %vm274, %v119, 0
    %v318 = vsel %vm274, %v120, 0
    %v321 = vsel %vm274, %v121, 0
    %v324 = vsel %vm274, %v122, 0
    %v327 = vsel %vm274, %v123, 0
    %v330 = vsel %vm274, %v124, 0
    %v333 = vsel %vm274, %v125, 0
    %v336 = vsel %vm274, %v126, 0
    %v339 = vsel %vm274, %v127, 0
    %v342 = vsel %vm274, %v128, 0
    %v345 = vsel %vm274, %v129, 0
    %347 = vmatprep.subr.mxu0 %v74
    %348 = vmatpush1.msra.mxu0 %v73
    %349 = vmatprep.subr.mxu0 %v76
    %350 = vmatpush1.msra.mxu0 %v75
    %351 = vmatprep.subr.mxu0 %v78
    %352 = vmatpush1.msra.mxu0 %v77
    %353 = vmatprep.subr.mxu0 %v80
    %354 = vmatpush1.msra.mxu0 %v79
    %355 = vmatprep.subr.mxu0 %v82
    %356 = vmatpush1.msra.mxu0 %v81
    %357 = vmatprep.subr.mxu0 %v84
    %358 = vmatpush1.msra.mxu0 %v83
    %359 = vmatprep.subr.mxu0 %v86
    %360 = vmatpush1.msra.mxu0 %v85
    %361 = vmatprep.subr.mxu0 %v88
    %362 = vmatpush1.msra.mxu0 %v87
    %363 = vmatprep.subr.mxu0 0.0
    %364 = vmatpush1.msra.mxu0 0.0
    %365 = vmatprep.subr.mxu0 0.0
    %366 = vmatpush1.msra.mxu0 0.0
    %367 = vmatprep.subr.mxu0 0.0
    %368 = vmatpush1.msra.mxu0 0.0
    %369 = vmatprep.subr.mxu0 0.0
    %370 = vmatpush1.msra.mxu0 0.0
    %371 = vmatprep.subr.mxu0 0.0
    %372 = vmatpush1.msra.mxu0 0.0
    %373 = vmatprep.subr.mxu0 0.0
    %374 = vmatpush1.msra.mxu0 0.0
    %375 = vmatprep.subr.mxu0 0.0
    %376 = vmatpush1.msra.mxu0 0.0
    %377 = vmatprep.subr.mxu0 0.0
    %378 = vmatpush1.msra.mxu0 0.0
    %379 = vmatprep.subr.mxu0 0.0
    %380 = vmatpush1.msra.mxu0 0.0
    %381 = vmatprep.subr.mxu0 0.0
    %382 = vmatpush1.msra.mxu0 0.0
    %383 = vmatprep.subr.mxu0 0.0
    %384 = vmatpush1.msra.mxu0 0.0
    %385 = vmatprep.subr.mxu0 0.0
    %386 = vmatpush1.msra.mxu0 0.0
    %387 = vmatprep.subr.mxu0 0.0
    %388 = vmatpush1.msra.mxu0 0.0
    %389 = vmatprep.subr.mxu0 0.0
    %390 = vmatpush1.msra.mxu0 0.0
    %391 = vmatprep.subr.mxu0 0.0
    %392 = vmatpush1.msra.mxu0 0.0
    %393 = vmatprep.subr.mxu0 0.0
    %394 = vmatpush1.msra.mxu0 0.0
    %395 = vmatprep.subr.mxu0 0.0
    %396 = vmatpush1.msra.mxu0 0.0
    %397 = vmatprep.subr.mxu0 0.0
    %398 = vmatpush1.msra.mxu0 0.0
    %399 = vmatprep.subr.mxu0 0.0
    %400 = vmatpush1.msra.mxu0 0.0
    %401 = vmatprep.subr.mxu0 0.0
    %402 = vmatpush1.msra.mxu0 0.0
    %403 = vmatprep.subr.mxu0 0.0
    %404 = vmatpush1.msra.mxu0 0.0
    %405 = vmatprep.subr.mxu0 0.0
    %406 = vmatpush1.msra.mxu0 0.0
    %407 = vmatprep.subr.mxu0 0.0
    %408 = vmatpush1.msra.mxu0 0.0
    %409 = vmatprep.subr.mxu0 0.0
    %410 = vmatpush1.msra.mxu0 0.0
    %411 = vmatprep.mubr.f32.mxu0 0.0
    %412 = vmatmul.mubr.f32.gmra.mrb[0].mxu0 %v276
    %v413 = vpop.f32.mrb[0].mxu0
    %v414 = vadd.f32 %v157, %v413
    %v415 = vpop.f32.mrb[0].mxu0
    %v416 = vadd.f32 %v157, %v415
    %417 = vmatprep.mubr.f32.mxu0 0.0
    %418 = vmatmul.mubr.f32.gmra.mrb[0].mxu0 %v279
    %v419 = vpop.f32.mrb[0].mxu0
    %v420 = vadd.f32 %v162, %v419
    %v421 = vpop.f32.mrb[0].mxu0
    %v422 = vadd.f32 %v162, %v421
    %423 = vmatprep.mubr.f32.mxu0 0.0
    %424 = vmatmul.mubr.f32.gmra.mrb[0].mxu0 %v282
    %v425 = vpop.f32.mrb[0].mxu0
    %v426 = vadd.f32 %v167, %v425
    %v427 = vpop.f32.mrb[0].mxu0
    %v428 = vadd.f32 %v167, %v427
    %429 = vmatprep.mubr.f32.mxu0 0.0
    %430 = vmatmul.mubr.f32.gmra.mrb[0].mxu0 %v285
    %v431 = vpop.f32.mrb[0].mxu0
    %v432 = vadd.f32 %v172, %v431
    %v433 = vpop.f32.mrb[0].mxu0
    %v434 = vadd.f32 %v172, %v433
    %435 = vmatprep.mubr.f32.mxu0 0.0
    %436 = vmatmul.mubr.f32.gmra.mrb[0].mxu0 %v288
    %v437 = vpop.f32.mrb[0].mxu0
    %v438 = vadd.f32 %v177, %v437
    %v439 = vpop.f32.mrb[0].mxu0
    %v440 = vadd.f32 %v177, %v439
    %441 = vmatprep.mubr.f32.mxu0 0.0
    %442 = vmatmul.mubr.f32.gmra.mrb[0].mxu0 %v291
    %v443 = vpop.f32.mrb[0].mxu0
    %v444 = vadd.f32 %v182, %v443
    %v445 = vpop.f32.mrb[0].mxu0
    %v446 = vadd.f32 %v182, %v445
    %447 = vmatprep.mubr.f32.mxu0 0.0
    %448 = vmatmul.mubr.f32.gmra.mrb[0].mxu0 %v294
    %v449 = vpop.f32.mrb[0].mxu0
    %v450 = vadd.f32 %v187, %v449
    %v451 = vpop.f32.mrb[0].mxu0
    %v452 = vadd.f32 %v187, %v451
    %453 = vmatprep.mubr.f32.mxu0 0.0
    %454 = vmatmul.mubr.f32.gmra.mrb[0].mxu0 %v297
    %v455 = vpop.f32.mrb[0].mxu0
    %v456 = vadd.f32 %v192, %v455
    %v457 = vpop.f32.mrb[0].mxu0
    %v458 = vadd.f32 %v192, %v457
    %459 = vmatprep.mubr.f32.mxu0 0.0
    %460 = vmatmul.mubr.f32.gmra.mrb[0].mxu0 %v300
    %v461 = vpop.f32.mrb[0].mxu0
    %v462 = vadd.f32 %v197, %v461
    %v463 = vpop.f32.mrb[0].mxu0
    %v464 = vadd.f32 %v197, %v463
    %465 = vmatprep.mubr.f32.mxu0 0.0
    %466 = vmatmul.mubr.f32.gmra.mrb[0].mxu0 %v303
    %v467 = vpop.f32.mrb[0].mxu0
    %v468 = vadd.f32 %v202, %v467
    %v469 = vpop.f32.mrb[0].mxu0
    %v470 = vadd.f32 %v202, %v469
    %471 = vmatprep.mubr.f32.mxu0 0.0
    %472 = vmatmul.mubr.f32.gmra.mrb[0].mxu0 %v306
    %v473 = vpop.f32.mrb[0].mxu0
    %v474 = vadd.f32 %v207, %v473
    %v475 = vpop.f32.mrb[0].mxu0
    %v476 = vadd.f32 %v207, %v475
    %477 = vmatprep.mubr.f32.mxu0 0.0
    %478 = vmatmul.mubr.f32.gmra.mrb[0].mxu0 %v309
    %v479 = vpop.f32.mrb[0].mxu0
    %v480 = vadd.f32 %v212, %v479
    %v481 = vpop.f32.mrb[0].mxu0
    %v482 = vadd.f32 %v212, %v481
    %483 = vmatprep.mubr.f32.mxu0 0.0
    %484 = vmatmul.mubr.f32.gmra.mrb[0].mxu0 %v312
    %v485 = vpop.f32.mrb[0].mxu0
    %v486 = vadd.f32 %v217, %v485
    %v487 = vpop.f32.mrb[0].mxu0
    %v488 = vadd.f32 %v217, %v487
    %489 = vmatprep.mubr.f32.mxu0 0.0
    %490 = vmatmul.mubr.f32.gmra.mrb[0].mxu0 %v315
    %v491 = vpop.f32.mrb[0].mxu0
    %v492 = vadd.f32 %v222, %v491
    %v493 = vpop.f32.mrb[0].mxu0
    %v494 = vadd.f32 %v222, %v493
    %495 = vmatprep.mubr.f32.mxu0 0.0
    %496 = vmatmul.mubr.f32.gmra.mrb[0].mxu0 %v318
    %v497 = vpop.f32.mrb[0].mxu0
    %v498 = vadd.f32 %v227, %v497
    %v499 = vpop.f32.mrb[0].mxu0
    %v500 = vadd.f32 %v227, %v499
    %501 = vmatprep.mubr.f32.mxu0 0.0
    %502 = vmatmul.mubr.f32.gmra.mrb[0].mxu0 %v321
    %v503 = vpop.f32.mrb[0].mxu0
    %v504 = vadd.f32 %v232, %v503
    %v505 = vpop.f32.mrb[0].mxu0
    %v506 = vadd.f32 %v232, %v505
    %507 = vmatprep.mubr.f32.mxu0 0.0
    %508 = vmatmul.mubr.f32.gmra.mrb[0].mxu0 %v324
    %v509 = vpop.f32.mrb[0].mxu0
    %v510 = vadd.f32 %v237, %v509
    %v511 = vpop.f32.mrb[0].mxu0
    %v512 = vadd.f32 %v237, %v511
    %513 = vmatprep.mubr.f32.mxu0 0.0
    %514 = vmatmul.mubr.f32.gmra.mrb[0].mxu0 %v327
    %v515 = vpop.f32.mrb[0].mxu0
    %v516 = vadd.f32 %v242, %v515
    %v517 = vpop.f32.mrb[0].mxu0
    %v518 = vadd.f32 %v242, %v517
    %519 = vmatprep.mubr.f32.mxu0 0.0
    %520 = vmatmul.mubr.f32.gmra.mrb[0].mxu0 %v330
    %v521 = vpop.f32.mrb[0].mxu0
    %v522 = vadd.f32 %v247, %v521
    %v523 = vpop.f32.mrb[0].mxu0
    %v524 = vadd.f32 %v247, %v523
    %525 = vmatprep.mubr.f32.mxu0 0.0
    %526 = vmatmul.mubr.f32.gmra.mrb[0].mxu0 %v333
    %v527 = vpop.f32.mrb[0].mxu0
    %v528 = vadd.f32 %v252, %v527
    %v529 = vpop.f32.mrb[0].mxu0
    %v530 = vadd.f32 %v252, %v529
    %531 = vmatprep.mubr.f32.mxu0 0.0
    %532 = vmatmul.mubr.f32.gmra.mrb[0].mxu0 %v336
    %v533 = vpop.f32.mrb[0].mxu0
    %v534 = vadd.f32 %v257, %v533
    %v535 = vpop.f32.mrb[0].mxu0
    %v536 = vadd.f32 %v257, %v535
    %537 = vmatprep.mubr.f32.mxu0 0.0
    %538 = vmatmul.mubr.f32.gmra.mrb[0].mxu0 %v339
    %v539 = vpop.f32.mrb[0].mxu0
    %v540 = vadd.f32 %v262, %v539
    %v541 = vpop.f32.mrb[0].mxu0
    %v542 = vadd.f32 %v262, %v541
    %543 = vmatprep.mubr.f32.mxu0 0.0
    %544 = vmatmul.mubr.f32.gmra.mrb[0].mxu0 %v342
    %v545 = vpop.f32.mrb[0].mxu0
    %v546 = vadd.f32 %v267, %v545
    %v547 = vpop.f32.mrb[0].mxu0
    %v548 = vadd.f32 %v267, %v547
    %549 = vmatprep.mubr.f32.mxu0 0.0
    %550 = vmatmul.mubr.f32.gmra.mrb[0].mxu0 %v345
    %v551 = vpop.f32.mrb[0].mxu0
    %v552 = vadd.f32 %v272, %v551
    %v553 = vpop.f32.mrb[0].mxu0
    %v554 = vadd.f32 %v272, %v553
    %555 = vdwg.mxu0
    %556 = vmatprep.subr.mxu0 %v91
    %557 = vmatpush1.msra.mxu0 %v90
    %558 = vmatprep.subr.mxu0 %v93
    %559 = vmatpush1.msra.mxu0 %v92
    %560 = vmatprep.subr.mxu0 %v95
    %561 = vmatpush1.msra.mxu0 %v94
    %562 = vmatprep.subr.mxu0 %v97
    %563 = vmatpush1.msra.mxu0 %v96
    %564 = vmatprep.subr.mxu0 %v99
    %565 = vmatpush1.msra.mxu0 %v98
    %566 = vmatprep.subr.mxu0 %v101
    %567 = vmatpush1.msra.mxu0 %v100
    %568 = vmatprep.subr.mxu0 %v103
    %569 = vmatpush1.msra.mxu0 %v102
    %570 = vmatprep.subr.mxu0 %v105
    %571 = vmatpush1.msra.mxu0 %v104
    %572 = vmatprep.subr.mxu0 0.0
    %573 = vmatpush1.msra.mxu0 0.0
    %574 = vmatprep.subr.mxu0 0.0
    %575 = vmatpush1.msra.mxu0 0.0
    %576 = vmatprep.subr.mxu0 0.0
    %577 = vmatpush1.msra.mxu0 0.0
    %578 = vmatprep.subr.mxu0 0.0
    %579 = vmatpush1.msra.mxu0 0.0
    %580 = vmatprep.subr.mxu0 0.0
    %581 = vmatpush1.msra.mxu0 0.0
    %582 = vmatprep.subr.mxu0 0.0
    %583 = vmatpush1.msra.mxu0 0.0
    %584 = vmatprep.subr.mxu0 0.0
    %585 = vmatpush1.msra.mxu0 0.0
    %586 = vmatprep.subr.mxu0 0.0
    %587 = vmatpush1.msra.mxu0 0.0
    %588 = vmatprep.subr.mxu0 0.0
    %589 = vmatpush1.msra.mxu0 0.0
    %590 = vmatprep.subr.mxu0 0.0
    %591 = vmatpush1.msra.mxu0 0.0
    %592 = vmatprep.subr.mxu0 0.0
    %593 = vmatpush1.msra.mxu0 0.0
    %594 = vmatprep.subr.mxu0 0.0
    %595 = vmatpush1.msra.mxu0 0.0
    %596 = vmatprep.subr.mxu0 0.0
    %597 = vmatpush1.msra.mxu0 0.0
    %598 = vmatprep.subr.mxu0 0.0
    %599 = vmatpush1.msra.mxu0 0.0
    %600 = vmatprep.subr.mxu0 0.0
    %601 = vmatpush1.msra.mxu0 0.0
    %602 = vmatprep.subr.mxu0 0.0
    %603 = vmatpush1.msra.mxu0 0.0
    %604 = vmatprep.subr.mxu0 0.0
    %605 = vmatpush1.msra.mxu0 0.0
    %606 = vmatprep.subr.mxu0 0.0
    %607 = vmatpush1.msra.mxu0 0.0
    %608 = vmatprep.subr.mxu0 0.0
    %609 = vmatpush1.msra.mxu0 0.0
    %610 = vmatprep.subr.mxu0 0.0
    %611 = vmatpush1.msra.mxu0 0.0
    %612 = vmatprep.subr.mxu0 0.0
    %613 = vmatpush1.msra.mxu0 0.0
    %614 = vmatprep.subr.mxu0 0.0
    %615 = vmatpush1.msra.mxu0 0.0
    %616 = vmatprep.subr.mxu0 0.0
    %617 = vmatpush1.msra.mxu0 0.0
    %618 = vmatprep.subr.mxu0 0.0
    %619 = vmatpush1.msra.mxu0 0.0
    %620 = vmatprep.mubr.f32.mxu0 0.0
    %621 = vmatmul.mubr.f32.gmra.mrb[0].mxu0 %v276
    %v622 = vpop.f32.mrb[0].mxu0
    %v623 = vadd.f32 %v157, %v622
    %v624 = vpop.f32.mrb[0].mxu0
    %v625 = vadd.f32 %v157, %v624
    %626 = vmatprep.mubr.f32.mxu0 0.0
    %627 = vmatmul.mubr.f32.gmra.mrb[0].mxu0 %v279
    %v628 = vpop.f32.mrb[0].mxu0
    %v629 = vadd.f32 %v162, %v628
    %v630 = vpop.f32.mrb[0].mxu0
    %v631 = vadd.f32 %v162, %v630
    %632 = vmatprep.mubr.f32.mxu0 0.0
    %633 = vmatmul.mubr.f32.gmra.mrb[0].mxu0 %v282
    %v634 = vpop.f32.mrb[0].mxu0
    %v635 = vadd.f32 %v167, %v634
    %v636 = vpop.f32.mrb[0].mxu0
    %v637 = vadd.f32 %v167, %v636
    %638 = vmatprep.mubr.f32.mxu0 0.0
    %639 = vmatmul.mubr.f32.gmra.mrb[0].mxu0 %v285
    %v640 = vpop.f32.mrb[0].mxu0
    %v641 = vadd.f32 %v172, %v640
    %v642 = vpop.f32.mrb[0].mxu0
    %v643 = vadd.f32 %v172, %v642
    %644 = vmatprep.mubr.f32.mxu0 0.0
    %645 = vmatmul.mubr.f32.gmra.mrb[0].mxu0 %v288
    %v646 = vpop.f32.mrb[0].mxu0
    %v647 = vadd.f32 %v177, %v646
    %v648 = vpop.f32.mrb[0].mxu0
    %v649 = vadd.f32 %v177, %v648
    %650 = vmatprep.mubr.f32.mxu0 0.0
    %651 = vmatmul.mubr.f32.gmra.mrb[0].mxu0 %v291
    %v652 = vpop.f32.mrb[0].mxu0
    %v653 = vadd.f32 %v182, %v652
    %v654 = vpop.f32.mrb[0].mxu0
    %v655 = vadd.f32 %v182, %v654
    %656 = vmatprep.mubr.f32.mxu0 0.0
    %657 = vmatmul.mubr.f32.gmra.mrb[0].mxu0 %v294
    %v658 = vpop.f32.mrb[0].mxu0
    %v659 = vadd.f32 %v187, %v658
    %v660 = vpop.f32.mrb[0].mxu0
    %v661 = vadd.f32 %v187, %v660
    %662 = vmatprep.mubr.f32.mxu0 0.0
    %663 = vmatmul.mubr.f32.gmra.mrb[0].mxu0 %v297
    %v664 = vpop.f32.mrb[0].mxu0
    %v665 = vadd.f32 %v192, %v664
    %v666 = vpop.f32.mrb[0].mxu0
    %v667 = vadd.f32 %v192, %v666
    %668 = vmatprep.mubr.f32.mxu0 0.0
    %669 = vmatmul.mubr.f32.gmra.mrb[0].mxu0 %v300
    %v670 = vpop.f32.mrb[0].mxu0
    %v671 = vadd.f32 %v197, %v670
    %v672 = vpop.f32.mrb[0].mxu0
    %v673 = vadd.f32 %v197, %v672
    %674 = vmatprep.mubr.f32.mxu0 0.0
    %675 = vmatmul.mubr.f32.gmra.mrb[0].mxu0 %v303
    %v676 = vpop.f32.mrb[0].mxu0
    %v677 = vadd.f32 %v202, %v676
    %v678 = vpop.f32.mrb[0].mxu0
    %v679 = vadd.f32 %v202, %v678
    %680 = vmatprep.mubr.f32.mxu0 0.0
    %681 = vmatmul.mubr.f32.gmra.mrb[0].mxu0 %v306
    %v682 = vpop.f32.mrb[0].mxu0
    %v683 = vadd.f32 %v207, %v682
    %v684 = vpop.f32.mrb[0].mxu0
    %v685 = vadd.f32 %v207, %v684
    %686 = vmatprep.mubr.f32.mxu0 0.0
    %687 = vmatmul.mubr.f32.gmra.mrb[0].mxu0 %v309
    %v688 = vpop.f32.mrb[0].mxu0
    %v689 = vadd.f32 %v212, %v688
    %v690 = vpop.f32.mrb[0].mxu0
    %v691 = vadd.f32 %v212, %v690
    %692 = vmatprep.mubr.f32.mxu0 0.0
    %693 = vmatmul.mubr.f32.gmra.mrb[0].mxu0 %v312
    %v694 = vpop.f32.mrb[0].mxu0
    %v695 = vadd.f32 %v217, %v694
    %v696 = vpop.f32.mrb[0].mxu0
    %v697 = vadd.f32 %v217, %v696
    %698 = vmatprep.mubr.f32.mxu0 0.0
    %699 = vmatmul.mubr.f32.gmra.mrb[0].mxu0 %v315
    %v700 = vpop.f32.mrb[0].mxu0
    %v701 = vadd.f32 %v222, %v700
    %v702 = vpop.f32.mrb[0].mxu0
    %v703 = vadd.f32 %v222, %v702
    %704 = vmatprep.mubr.f32.mxu0 0.0
    %705 = vmatmul.mubr.f32.gmra.mrb[0].mxu0 %v318
    %v706 = vpop.f32.mrb[0].mxu0
    %v707 = vadd.f32 %v227, %v706
    %v708 = vpop.f32.mrb[0].mxu0
    %v709 = vadd.f32 %v227, %v708
    %710 = vmatprep.mubr.f32.mxu0 0.0
    %711 = vmatmul.mubr.f32.gmra.mrb[0].mxu0 %v321
    %v712 = vpop.f32.mrb[0].mxu0
    %v713 = vadd.f32 %v232, %v712
    %v714 = vpop.f32.mrb[0].mxu0
    %v715 = vadd.f32 %v232, %v714
    %716 = vmatprep.mubr.f32.mxu0 0.0
    %717 = vmatmul.mubr.f32.gmra.mrb[0].mxu0 %v324
    %v718 = vpop.f32.mrb[0].mxu0
    %v719 = vadd.f32 %v237, %v718
    %v720 = vpop.f32.mrb[0].mxu0
    %v721 = vadd.f32 %v237, %v720
    %722 = vmatprep.mubr.f32.mxu0 0.0
    %723 = vmatmul.mubr.f32.gmra.mrb[0].mxu0 %v327
    %v724 = vpop.f32.mrb[0].mxu0
    %v725 = vadd.f32 %v242, %v724
    %v726 = vpop.f32.mrb[0].mxu0
    %v727 = vadd.f32 %v242, %v726
    %728 = vmatprep.mubr.f32.mxu0 0.0
    %729 = vmatmul.mubr.f32.gmra.mrb[0].mxu0 %v330
    %v730 = vpop.f32.mrb[0].mxu0
    %v731 = vadd.f32 %v247, %v730
    %v732 = vpop.f32.mrb[0].mxu0
    %v733 = vadd.f32 %v247, %v732
    %734 = vmatprep.mubr.f32.mxu0 0.0
    %735 = vmatmul.mubr.f32.gmra.mrb[0].mxu0 %v333
    %v736 = vpop.f32.mrb[0].mxu0
    %v737 = vadd.f32 %v252, %v736
    %v738 = vpop.f32.mrb[0].mxu0
    %v739 = vadd.f32 %v252, %v738
    %740 = vmatprep.mubr.f32.mxu0 0.0
    %741 = vmatmul.mubr.f32.gmra.mrb[0].mxu0 %v336
    %v742 = vpop.f32.mrb[0].mxu0
    %v743 = vadd.f32 %v257, %v742
    %v744 = vpop.f32.mrb[0].mxu0
    %v745 = vadd.f32 %v257, %v744
    %746 = vmatprep.mubr.f32.mxu0 0.0
    %747 = vmatmul.mubr.f32.gmra.mrb[0].mxu0 %v339
    %v748 = vpop.f32.mrb[0].mxu0
    %v749 = vadd.f32 %v262, %v748
    %v750 = vpop.f32.mrb[0].mxu0
    %v751 = vadd.f32 %v262, %v750
    %752 = vmatprep.mubr.f32.mxu0 0.0
    %753 = vmatmul.mubr.f32.gmra.mrb[0].mxu0 %v342
    %v754 = vpop.f32.mrb[0].mxu0
    %v755 = vadd.f32 %v267, %v754
    %v756 = vpop.f32.mrb[0].mxu0
    %v757 = vadd.f32 %v267, %v756
    %758 = vmatprep.mubr.f32.mxu0 0.0
    %759 = vmatmul.mubr.f32.gmra.mrb[0].mxu0 %v345
    %v760 = vpop.f32.mrb[0].mxu0
    %v761 = vadd.f32 %v272, %v760
    %v762 = vpop.f32.mrb[0].mxu0
    %v763 = vadd.f32 %v272, %v762
    %764 = vdwg.mxu0
    %765 = vst [vmem:[#allocation2] sm:$0xff] %v414
    %766 = vst [vmem:[#allocation2 + $0x8] sm:$0xff] %v416
    %767 = vst [vmem:[#allocation2 + $0x10] sm:$0xff] %v623
    %768 = vst [vmem:[#allocation2 + $0x18] sm:$0xff] %v625
    %769 = vst [vmem:[#allocation2 + $0x20] sm:$0xff] %v420
    %770 = vst [vmem:[#allocation2 + $0x28] sm:$0xff] %v422
    %771 = vst [vmem:[#allocation2 + $0x30] sm:$0xff] %v629
    %772 = vst [vmem:[#allocation2 + $0x38] sm:$0xff] %v631
    %773 = vst [vmem:[#allocation2 + $0x40] sm:$0xff] %v426
    %774 = vst [vmem:[#allocation2 + $0x48] sm:$0xff] %v428
    %775 = vst [vmem:[#allocation2 + $0x50] sm:$0xff] %v635
    %776 = vst [vmem:[#allocation2 + $0x58] sm:$0xff] %v637
    %777 = vst [vmem:[#allocation2 + $0x60] sm:$0xff] %v432
    %778 = vst [vmem:[#allocation2 + $0x68] sm:$0xff] %v434
    %779 = vst [vmem:[#allocation2 + $0x70] sm:$0xff] %v641
    %780 = vst [vmem:[#allocation2 + $0x78] sm:$0xff] %v643
    %781 = vst [vmem:[#allocation2 + $0x80] sm:$0xff] %v438
    %782 = vst [vmem:[#allocation2 + $0x88] sm:$0xff] %v440
    %783 = vst [vmem:[#allocation2 + $0x90] sm:$0xff] %v647
    %784 = vst [vmem:[#allocation2 + $0x98] sm:$0xff] %v649
    %785 = vst [vmem:[#allocation2 + $0xa0] sm:$0xff] %v444
    %786 = vst [vmem:[#allocation2 + $0xa8] sm:$0xff] %v446
    %787 = vst [vmem:[#allocation2 + $0xb0] sm:$0xff] %v653
    %788 = vst [vmem:[#allocation2 + $0xb8] sm:$0xff] %v655
    %789 = vst [vmem:[#allocation2 + $0xc0] sm:$0xff] %v450
    %790 = vst [vmem:[#allocation2 + $0xc8] sm:$0xff] %v452
    %791 = vst [vmem:[#allocation2 + $0xd0] sm:$0xff] %v659
    %792 = vst [vmem:[#allocation2 + $0xd8] sm:$0xff] %v661
    %793 = vst [vmem:[#allocation2 + $0xe0] sm:$0xff] %v456
    %794 = vst [vmem:[#allocation2 + $0xe8] sm:$0xff] %v458
    %795 = vst [vmem:[#allocation2 + $0xf0] sm:$0xff] %v665
    %796 = vst [vmem:[#allocation2 + $0xf8] sm:$0xff] %v667
    %797 = vst [vmem:[#allocation2 + $0x100] sm:$0xff] %v462
    %798 = vst [vmem:[#allocation2 + $0x108] sm:$0xff] %v464
    %799 = vst [vmem:[#allocation2 + $0x110] sm:$0xff] %v671
    %800 = vst [vmem:[#allocation2 + $0x118] sm:$0xff] %v673
    %801 = vst [vmem:[#allocation2 + $0x120] sm:$0xff] %v468
    %802 = vst [vmem:[#allocation2 + $0x128] sm:$0xff] %v470
    %803 = vst [vmem:[#allocation2 + $0x130] sm:$0xff] %v677
    %804 = vst [vmem:[#allocation2 + $0x138] sm:$0xff] %v679
    %805 = vst [vmem:[#allocation2 + $0x140] sm:$0xff] %v474
    %806 = vst [vmem:[#allocation2 + $0x148] sm:$0xff] %v476
    %807 = vst [vmem:[#allocation2 + $0x150] sm:$0xff] %v683
    %808 = vst [vmem:[#allocation2 + $0x158] sm:$0xff] %v685
    %809 = vst [vmem:[#allocation2 + $0x160] sm:$0xff] %v480
    %810 = vst [vmem:[#allocation2 + $0x168] sm:$0xff] %v482
    %811 = vst [vmem:[#allocation2 + $0x170] sm:$0xff] %v689
    %812 = vst [vmem:[#allocation2 + $0x178] sm:$0xff] %v691
    %813 = vst [vmem:[#allocation2 + $0x180] sm:$0xff] %v486
    %814 = vst [vmem:[#allocation2 + $0x188] sm:$0xff] %v488
    %815 = vst [vmem:[#allocation2 + $0x190] sm:$0xff] %v695
    %816 = vst [vmem:[#allocation2 + $0x198] sm:$0xff] %v697
    %817 = vst [vmem:[#allocation2 + $0x1a0] sm:$0xff] %v492
    %818 = vst [vmem:[#allocation2 + $0x1a8] sm:$0xff] %v494
    %819 = vst [vmem:[#allocation2 + $0x1b0] sm:$0xff] %v701
    %820 = vst [vmem:[#allocation2 + $0x1b8] sm:$0xff] %v703
    %821 = vst [vmem:[#allocation2 + $0x1c0] sm:$0xff] %v498
    %822 = vst [vmem:[#allocation2 + $0x1c8] sm:$0xff] %v500
    %823 = vst [vmem:[#allocation2 + $0x1d0] sm:$0xff] %v707
    %824 = vst [vmem:[#allocation2 + $0x1d8] sm:$0xff] %v709
    %825 = vst [vmem:[#allocation2 + $0x1e0] sm:$0xff] %v504
    %826 = vst [vmem:[#allocation2 + $0x1e8] sm:$0xff] %v506
    %827 = vst [vmem:[#allocation2 + $0x1f0] sm:$0xff] %v713
    %828 = vst [vmem:[#allocation2 + $0x1f8] sm:$0xff] %v715
    %829 = vst [vmem:[#allocation2 + $0x200] sm:$0xff] %v510
    %830 = vst [vmem:[#allocation2 + $0x208] sm:$0xff] %v512
    %831 = vst [vmem:[#allocation2 + $0x210] sm:$0xff] %v719
    %832 = vst [vmem:[#allocation2 + $0x218] sm:$0xff] %v721
    %833 = vst [vmem:[#allocation2 + $0x220] sm:$0xff] %v516
    %834 = vst [vmem:[#allocation2 + $0x228] sm:$0xff] %v518
    %835 = vst [vmem:[#allocation2 + $0x230] sm:$0xff] %v725
    %836 = vst [vmem:[#allocation2 + $0x238] sm:$0xff] %v727
    %837 = vst [vmem:[#allocation2 + $0x240] sm:$0xff] %v522
    %838 = vst [vmem:[#allocation2 + $0x248] sm:$0xff] %v524
    %839 = vst [vmem:[#allocation2 + $0x250] sm:$0xff] %v731
    %840 = vst [vmem:[#allocation2 + $0x258] sm:$0xff] %v733
    %841 = vst [vmem:[#allocation2 + $0x260] sm:$0xff] %v528
    %842 = vst [vmem:[#allocation2 + $0x268] sm:$0xff] %v530
    %843 = vst [vmem:[#allocation2 + $0x270] sm:$0xff] %v737
    %844 = vst [vmem:[#allocation2 + $0x278] sm:$0xff] %v739
    %845 = vst [vmem:[#allocation2 + $0x280] sm:$0xff] %v534
    %846 = vst [vmem:[#allocation2 + $0x288] sm:$0xff] %v536
    %847 = vst [vmem:[#allocation2 + $0x290] sm:$0xff] %v743
    %848 = vst [vmem:[#allocation2 + $0x298] sm:$0xff] %v745
    %849 = vst [vmem:[#allocation2 + $0x2a0] sm:$0xff] %v540
    %850 = vst [vmem:[#allocation2 + $0x2a8] sm:$0xff] %v542
    %851 = vst [vmem:[#allocation2 + $0x2b0] sm:$0xff] %v749
    %852 = vst [vmem:[#allocation2 + $0x2b8] sm:$0xff] %v751
    %853 = vst [vmem:[#allocation2 + $0x2c0] sm:$0xff] %v546
    %854 = vst [vmem:[#allocation2 + $0x2c8] sm:$0xff] %v548
    %855 = vst [vmem:[#allocation2 + $0x2d0] sm:$0xff] %v755
    %856 = vst [vmem:[#allocation2 + $0x2d8] sm:$0xff] %v757
    %857 = vst [vmem:[#allocation2 + $0x2e0] sm:$0xff] %v552
    %858 = vst [vmem:[#allocation2 + $0x2e8] sm:$0xff] %v554
    %859 = vst [vmem:[#allocation2 + $0x2f0] sm:$0xff] %v761
    %860 = vst [vmem:[#allocation2 + $0x2f8] sm:$0xff] %v763
    %v861 = vld [vmem:[#allocation2] sm:$0xff]
    %v862 = vld [vmem:[#allocation2 + $0x8] sm:$0xff]
    %v863 = vld [vmem:[#allocation2 + $0x10] sm:$0xff]
    %v864 = vld [vmem:[#allocation2 + $0x18] sm:$0xff]
    %v865 = vld [vmem:[#allocation2 + $0x100] sm:$0xff]
    %v866 = vld [vmem:[#allocation2 + $0x108] sm:$0xff]
    %v867 = vld [vmem:[#allocation2 + $0x110] sm:$0xff]
    %v868 = vld [vmem:[#allocation2 + $0x118] sm:$0xff]
    %v869 = vmul.f32 %v861, %v865
    %v870 = vmul.f32 %v862, %v866
    %v871 = vmul.f32 %v861, %v867
    %v872 = vmul.f32 %v862, %v868
    %v873 = vmul.f32 %v863, %v865
    %v874 = vmul.f32 %v864, %v866
    %v875 = vmul.f32 %v863, %v867
    %v876 = vmul.f32 %v864, %v868
    %v877 = vld [vmem:[#allocation2 + $0x20] sm:$0xff]
    %v878 = vld [vmem:[#allocation2 + $0x28] sm:$0xff]
    %v879 = vld [vmem:[#allocation2 + $0x30] sm:$0xff]
    %v880 = vld [vmem:[#allocation2 + $0x38] sm:$0xff]
    %v881 = vld [vmem:[#allocation2 + $0x120] sm:$0xff]
    %v882 = vld [vmem:[#allocation2 + $0x128] sm:$0xff]
    %v883 = vld [vmem:[#allocation2 + $0x130] sm:$0xff]
    %v884 = vld [vmem:[#allocation2 + $0x138] sm:$0xff]
    %v885 = vmul.f32 %v877, %v881
    %v886 = vmul.f32 %v878, %v882
    %v887 = vadd.f32 %v869, %v885
    %v888 = vadd.f32 %v870, %v886
    %v889 = vmul.f32 %v877, %v883
    %v890 = vmul.f32 %v878, %v884
    %v891 = vadd.f32 %v871, %v889
    %v892 = vadd.f32 %v872, %v890
    %v893 = vmul.f32 %v879, %v881
    %v894 = vmul.f32 %v880, %v882
    %v895 = vadd.f32 %v873, %v893
    %v896 = vadd.f32 %v874, %v894
    %v897 = vmul.f32 %v879, %v883
    %v898 = vmul.f32 %v880, %v884
    %v899 = vadd.f32 %v875, %v897
    %v900 = vadd.f32 %v876, %v898
    %v901 = vld [vmem:[#allocation2 + $0x40] sm:$0xff]
    %v902 = vld [vmem:[#allocation2 + $0x48] sm:$0xff]
    %v903 = vld [vmem:[#allocation2 + $0x50] sm:$0xff]
    %v904 = vld [vmem:[#allocation2 + $0x58] sm:$0xff]
    %v905 = vld [vmem:[#allocation2 + $0x140] sm:$0xff]
    %v906 = vld [vmem:[#allocation2 + $0x148] sm:$0xff]
    %v907 = vld [vmem:[#allocation2 + $0x150] sm:$0xff]
    %v908 = vld [vmem:[#allocation2 + $0x158] sm:$0xff]
    %v909 = vmul.f32 %v901, %v905
    %v910 = vmul.f32 %v902, %v906
    %v911 = vadd.f32 %v887, %v909
    %v912 = vadd.f32 %v888, %v910
    %v913 = vmul.f32 %v901, %v907
    %v914 = vmul.f32 %v902, %v908
    %v915 = vadd.f32 %v891, %v913
    %v916 = vadd.f32 %v892, %v914
    %v917 = vmul.f32 %v903, %v905
    %v918 = vmul.f32 %v904, %v906
    %v919 = vadd.f32 %v895, %v917
    %v920 = vadd.f32 %v896, %v918
    %v921 = vmul.f32 %v903, %v907
    %v922 = vmul.f32 %v904, %v908
    %v923 = vadd.f32 %v899, %v921
    %v924 = vadd.f32 %v900, %v922
    %v925 = vld [vmem:[#allocation2 + $0x60] sm:$0xff]
    %v926 = vld [vmem:[#allocation2 + $0x68] sm:$0xff]
    %v927 = vld [vmem:[#allocation2 + $0x70] sm:$0xff]
    %v928 = vld [vmem:[#allocation2 + $0x78] sm:$0xff]
    %v929 = vld [vmem:[#allocation2 + $0x160] sm:$0xff]
    %v930 = vld [vmem:[#allocation2 + $0x168] sm:$0xff]
    %v931 = vld [vmem:[#allocation2 + $0x170] sm:$0xff]
    %v932 = vld [vmem:[#allocation2 + $0x178] sm:$0xff]
    %v933 = vmul.f32 %v925, %v929
    %v934 = vmul.f32 %v926, %v930
    %v935 = vadd.f32 %v911, %v933
    %v936 = vadd.f32 %v912, %v934
    %v937 = vmul.f32 %v925, %v931
    %v938 = vmul.f32 %v926, %v932
    %v939 = vadd.f32 %v915, %v937
    %v940 = vadd.f32 %v916, %v938
    %v941 = vmul.f32 %v927, %v929
    %v942 = vmul.f32 %v928, %v930
    %v943 = vadd.f32 %v919, %v941
    %v944 = vadd.f32 %v920, %v942
    %v945 = vmul.f32 %v927, %v931
    %v946 = vmul.f32 %v928, %v932
    %v947 = vadd.f32 %v923, %v945
    %v948 = vadd.f32 %v924, %v946
    %v949 = vld [vmem:[#allocation2 + $0x80] sm:$0xff]
    %v950 = vld [vmem:[#allocation2 + $0x88] sm:$0xff]
    %v951 = vld [vmem:[#allocation2 + $0x90] sm:$0xff]
    %v952 = vld [vmem:[#allocation2 + $0x98] sm:$0xff]
    %v953 = vld [vmem:[#allocation2 + $0x180] sm:$0xff]
    %v954 = vld [vmem:[#allocation2 + $0x188] sm:$0xff]
    %v955 = vld [vmem:[#allocation2 + $0x190] sm:$0xff]
    %v956 = vld [vmem:[#allocation2 + $0x198] sm:$0xff]
    %v957 = vmul.f32 %v949, %v953
    %v958 = vmul.f32 %v950, %v954
    %v959 = vadd.f32 %v935, %v957
    %v960 = vadd.f32 %v936, %v958
    %v961 = vmul.f32 %v949, %v955
    %v962 = vmul.f32 %v950, %v956
    %v963 = vadd.f32 %v939, %v961
    %v964 = vadd.f32 %v940, %v962
    %v965 = vmul.f32 %v951, %v953
    %v966 = vmul.f32 %v952, %v954
    %v967 = vadd.f32 %v943, %v965
    %v968 = vadd.f32 %v944, %v966
    %v969 = vmul.f32 %v951, %v955
    %v970 = vmul.f32 %v952, %v956
    %v971 = vadd.f32 %v947, %v969
    %v972 = vadd.f32 %v948, %v970
    %v973 = vld [vmem:[#allocation2 + $0xa0] sm:$0xff]
    %v974 = vld [vmem:[#allocation2 + $0xa8] sm:$0xff]
    %v975 = vld [vmem:[#allocation2 + $0xb0] sm:$0xff]
    %v976 = vld [vmem:[#allocation2 + $0xb8] sm:$0xff]
    %v977 = vld [vmem:[#allocation2 + $0x1a0] sm:$0xff]
    %v978 = vld [vmem:[#allocation2 + $0x1a8] sm:$0xff]
    %v979 = vld [vmem:[#allocation2 + $0x1b0] sm:$0xff]
    %v980 = vld [vmem:[#allocation2 + $0x1b8] sm:$0xff]
    %v981 = vmul.f32 %v973, %v977
    %v982 = vmul.f32 %v974, %v978
    %v983 = vadd.f32 %v959, %v981
    %v984 = vadd.f32 %v960, %v982
    %v985 = vmul.f32 %v973, %v979
    %v986 = vmul.f32 %v974, %v980
    %v987 = vadd.f32 %v963, %v985
    %v988 = vadd.f32 %v964, %v986
    %v989 = vmul.f32 %v975, %v977
    %v990 = vmul.f32 %v976, %v978
    %v991 = vadd.f32 %v967, %v989
    %v992 = vadd.f32 %v968, %v990
    %v993 = vmul.f32 %v975, %v979
    %v994 = vmul.f32 %v976, %v980
    %v995 = vadd.f32 %v971, %v993
    %v996 = vadd.f32 %v972, %v994
    %v997 = vld [vmem:[#allocation2 + $0xc0] sm:$0xff]
    %v998 = vld [vmem:[#allocation2 + $0xc8] sm:$0xff]
    %v999 = vld [vmem:[#allocation2 + $0xd0] sm:$0xff]
    %v1000 = vld [vmem:[#allocation2 + $0xd8] sm:$0xff]
    %v1001 = vld [vmem:[#allocation2 + $0x1c0] sm:$0xff]
    %v1002 = vld [vmem:[#allocation2 + $0x1c8] sm:$0xff]
    %v1003 = vld [vmem:[#allocation2 + $0x1d0] sm:$0xff]
    %v1004 = vld [vmem:[#allocation2 + $0x1d8] sm:$0xff]
    %v1005 = vmul.f32 %v997, %v1001
    %v1006 = vmul.f32 %v998, %v1002
    %v1007 = vadd.f32 %v983, %v1005
    %v1008 = vadd.f32 %v984, %v1006
    %v1009 = vmul.f32 %v997, %v1003
    %v1010 = vmul.f32 %v998, %v1004
    %v1011 = vadd.f32 %v987, %v1009
    %v1012 = vadd.f32 %v988, %v1010
    %v1013 = vmul.f32 %v999, %v1001
    %v1014 = vmul.f32 %v1000, %v1002
    %v1015 = vadd.f32 %v991, %v1013
    %v1016 = vadd.f32 %v992, %v1014
    %v1017 = vmul.f32 %v999, %v1003
    %v1018 = vmul.f32 %v1000, %v1004
    %v1019 = vadd.f32 %v995, %v1017
    %v1020 = vadd.f32 %v996, %v1018
    %v1021 = vld [vmem:[#allocation2 + $0xe0] sm:$0xff]
    %v1022 = vld [vmem:[#allocation2 + $0xe8] sm:$0xff]
    %v1023 = vld [vmem:[#allocation2 + $0xf0] sm:$0xff]
    %v1024 = vld [vmem:[#allocation2 + $0xf8] sm:$0xff]
    %v1025 = vld [vmem:[#allocation2 + $0x1e0] sm:$0xff]
    %v1026 = vld [vmem:[#allocation2 + $0x1e8] sm:$0xff]
    %v1027 = vld [vmem:[#allocation2 + $0x1f0] sm:$0xff]
    %v1028 = vld [vmem:[#allocation2 + $0x1f8] sm:$0xff]
    %v1029 = vmul.f32 %v1021, %v1025
    %v1030 = vmul.f32 %v1022, %v1026
    %v1031 = vadd.f32 %v1007, %v1029
    %v1032 = vadd.f32 %v1008, %v1030
    %v1033 = vmul.f32 %v1021, %v1027
    %v1034 = vmul.f32 %v1022, %v1028
    %v1035 = vadd.f32 %v1011, %v1033
    %v1036 = vadd.f32 %v1012, %v1034
    %v1037 = vmul.f32 %v1023, %v1025
    %v1038 = vmul.f32 %v1024, %v1026
    %v1039 = vadd.f32 %v1015, %v1037
    %v1040 = vadd.f32 %v1016, %v1038
    %v1041 = vmul.f32 %v1023, %v1027
    %v1042 = vmul.f32 %v1024, %v1028
    %v1043 = vadd.f32 %v1019, %v1041
    %v1044 = vadd.f32 %v1020, %v1042
    %v1045 = vmax.f32 %v1031, %v1035
    %v1046 = vmax.f32 %v1032, %v1036
    %v1047 = vsub.f32 %v1031, %v1045
    %v1048 = vsub.f32 %v1032, %v1046
    %v1049 = vmul.f32 %v1047, 1.442695
    %v1050 = vpow.pop %v1049
    %v1051 = vmul.f32 %v1048, 1.442695
    %v1052 = vpow.pop %v1051
    %v1053 = vsub.f32 %v1035, %v1045
    %v1054 = vsub.f32 %v1036, %v1046
    %v1055 = vmul.f32 %v1053, 1.442695
    %v1056 = vpow.pop %v1055
    %v1057 = vmul.f32 %v1054, 1.442695
    %v1058 = vpow.pop %v1057
    %v1059 = vadd.f32 %v1050, %v1056
    %v1060 = vadd.f32 %v1052, %v1058
    %v1061 = vrcp.pop %v1059
    %v1062 = vmul.f32 1.0, %v1061
    %v1063 = vrcp.pop %v1060
    %v1064 = vmul.f32 1.0, %v1063
    %v1065 = vmul.f32 %v1050, %v1062
    %v1066 = vmul.f32 %v1052, %v1064
    %v1067 = vmul.f32 %v1056, %v1062
    %v1068 = vmul.f32 %v1058, %v1064
    %v1069 = vmax.f32 %v1039, %v1043
    %v1070 = vmax.f32 %v1040, %v1044
    %v1071 = vsub.f32 %v1039, %v1069
    %v1072 = vsub.f32 %v1040, %v1070
    %v1073 = vmul.f32 %v1071, 1.442695
    %v1074 = vpow.pop %v1073
    %v1075 = vmul.f32 %v1072, 1.442695
    %v1076 = vpow.pop %v1075
    %v1077 = vsub.f32 %v1043, %v1069
    %v1078 = vsub.f32 %v1044, %v1070
    %v1079 = vmul.f32 %v1077, 1.442695
    %v1080 = vpow.pop %v1079
    %v1081 = vmul.f32 %v1078, 1.442695
    %v1082 = vpow.pop %v1081
    %v1083 = vadd.f32 %v1074, %v1080
    %v1084 = vadd.f32 %v1076, %v1082
    %v1085 = vrcp.pop %v1083
    %v1086 = vmul.f32 1.0, %v1085
    %v1087 = vrcp.pop %v1084
    %v1088 = vmul.f32 1.0, %v1087
    %v1089 = vmul.f32 %v1074, %v1086
    %v1090 = vmul.f32 %v1076, %v1088
    %v1091 = vmul.f32 %v1080, %v1086
    %v1092 = vmul.f32 %v1082, %v1088
    %v1093 = vld [vmem:[#allocation2 + $0x200] sm:$0xff]
    %v1094 = vld [vmem:[#allocation2 + $0x208] sm:$0xff]
    %v1095 = vld [vmem:[#allocation2 + $0x210] sm:$0xff]
    %v1096 = vld [vmem:[#allocation2 + $0x218] sm:$0xff]
    %v1097 = vmul.f32 %v1065, %v1093
    %v1098 = vmul.f32 %v1066, %v1094
    %v1099 = vmul.f32 %v1067, %v1095
    %v1100 = vmul.f32 %v1068, %v1096
    %v1101 = vadd.f32 %v1097, %v1099
    %v1102 = vadd.f32 %v1098, %v1100
    %v1103 = vld [vmem:[#allocation3] sm:$0xff]
    %v1104 = vld [vmem:[#allocation3 + $0x8] sm:$0xff]
    %v1105 = vadd.f32 %v1103, %v1101
    %v1106 = vadd.f32 %v1104, %v1102
    %1107 = vst [vmem:[#allocation3] sm:$0xff] %v1105
    %1108 = vst [vmem:[#allocation3 + $0x8] sm:$0xff] %v1106
    %v1109 = vmul.f32 %v1089, %v1093
    %v1110 = vmul.f32 %v1090, %v1094
    %v1111 = vmul.f32 %v1091, %v1095
    %v1112 = vmul.f32 %v1092, %v1096
    %v1113 = vadd.f32 %v1109, %v1111
    %v1114 = vadd.f32 %v1110, %v1112
    %s1115 = scalar_lea.vmem [#allocation3], 128
    %v1116 = vld [vmem:[%s1115] sm:$0xff]
    %v1117 = vld [vmem:[%s1115 + $0x8] sm:$0xff]
    %v1118 = vadd.f32 %v1116, %v1113
    %v1119 = vadd.f32 %v1117, %v1114
    %1120 = vst [vmem:[%s1115] sm:$0xff] %v1118
    %1121 = vst [vmem:[%s1115 + $0x8] sm:$0xff] %v1119
    %v1122 = vld [vmem:[#allocation2 + $0x220] sm:$0xff]
    %v1123 = vld [vmem:[#allocation2 + $0x228] sm:$0xff]
    %v1124 = vld [vmem:[#allocation2 + $0x230] sm:$0xff]
    %v1125 = vld [vmem:[#allocation2 + $0x238] sm:$0xff]
    %v1126 = vmul.f32 %v1065, %v1122
    %v1127 = vmul.f32 %v1066, %v1123
    %v1128 = vmul.f32 %v1067, %v1124
    %v1129 = vmul.f32 %v1068, %v1125
    %v1130 = vadd.f32 %v1126, %v1128
    %v1131 = vadd.f32 %v1127, %v1129
    %v1132 = vld [vmem:[#allocation3 + $0x10] sm:$0xff]
    %v1133 = vld [vmem:[#allocation3 + $0x18] sm:$0xff]
    %v1134 = vadd.f32 %v1132, %v1130
    %v1135 = vadd.f32 %v1133, %v1131
    %1136 = vst [vmem:[#allocation3 + $0x10] sm:$0xff] %v1134
    %1137 = vst [vmem:[#allocation3 + $0x18] sm:$0xff] %v1135
    %v1138 = vmul.f32 %v1089, %v1122
    %v1139 = vmul.f32 %v1090, %v1123
    %v1140 = vmul.f32 %v1091, %v1124
    %v1141 = vmul.f32 %v1092, %v1125
    %v1142 = vadd.f32 %v1138, %v1140
    %v1143 = vadd.f32 %v1139, %v1141
    %v1144 = vld [vmem:[%s1115 + $0x10] sm:$0xff]
    %v1145 = vld [vmem:[%s1115 + $0x18] sm:$0xff]
    %v1146 = vadd.f32 %v1144, %v1142
    %v1147 = vadd.f32 %v1145, %v1143
    %1148 = vst [vmem:[%s1115 + $0x10] sm:$0xff] %v1146
    %1149 = vst [vmem:[%s1115 + $0x18] sm:$0xff] %v1147
    %v1150 = vld [vmem:[#allocation2 + $0x240] sm:$0xff]
    %v1151 = vld [vmem:[#allocation2 + $0x248] sm:$0xff]
    %v1152 = vld [vmem:[#allocation2 + $0x250] sm:$0xff]
    %v1153 = vld [vmem:[#allocation2 + $0x258] sm:$0xff]
    %v1154 = vmul.f32 %v1065, %v1150
    %v1155 = vmul.f32 %v1066, %v1151
    %v1156 = vmul.f32 %v1067, %v1152
    %v1157 = vmul.f32 %v1068, %v1153
    %v1158 = vadd.f32 %v1154, %v1156
    %v1159 = vadd.f32 %v1155, %v1157
    %v1160 = vld [vmem:[#allocation3 + $0x20] sm:$0xff]
    %v1161 = vld [vmem:[#allocation3 + $0x28] sm:$0xff]
    %v1162 = vadd.f32 %v1160, %v1158
    %v1163 = vadd.f32 %v1161, %v1159
    %1164 = vst [vmem:[#allocation3 + $0x20] sm:$0xff] %v1162
    %1165 = vst [vmem:[#allocation3 + $0x28] sm:$0xff] %v1163
    %v1166 = vmul.f32 %v1089, %v1150
    %v1167 = vmul.f32 %v1090, %v1151
    %v1168 = vmul.f32 %v1091, %v1152
    %v1169 = vmul.f32 %v1092, %v1153
    %v1170 = vadd.f32 %v1166, %v1168
    %v1171 = vadd.f32 %v1167, %v1169
    %v1172 = vld [vmem:[%s1115 + $0x20] sm:$0xff]
    %v1173 = vld [vmem:[%s1115 + $0x28] sm:$0xff]
    %v1174 = vadd.f32 %v1172, %v1170
    %v1175 = vadd.f32 %v1173, %v1171
    %1176 = vst [vmem:[%s1115 + $0x20] sm:$0xff] %v1174
    %1177 = vst [vmem:[%s1115 + $0x28] sm:$0xff] %v1175
    %v1178 = vld [vmem:[#allocation2 + $0x260] sm:$0xff]
    %v1179 = vld [vmem:[#allocation2 + $0x268] sm:$0xff]
    %v1180 = vld [vmem:[#allocation2 + $0x270] sm:$0xff]
    %v1181 = vld [vmem:[#allocation2 + $0x278] sm:$0xff]
    %v1182 = vmul.f32 %v1065, %v1178
    %v1183 = vmul.f32 %v1066, %v1179
    %v1184 = vmul.f32 %v1067, %v1180
    %v1185 = vmul.f32 %v1068, %v1181
    %v1186 = vadd.f32 %v1182, %v1184
    %v1187 = vadd.f32 %v1183, %v1185
    %v1188 = vld [vmem:[#allocation3 + $0x30] sm:$0xff]
    %v1189 = vld [vmem:[#allocation3 + $0x38] sm:$0xff]
    %v1190 = vadd.f32 %v1188, %v1186
    %v1191 = vadd.f32 %v1189, %v1187
    %1192 = vst [vmem:[#allocation3 + $0x30] sm:$0xff] %v1190
    %1193 = vst [vmem:[#allocation3 + $0x38] sm:$0xff] %v1191
    %v1194 = vmul.f32 %v1089, %v1178
    %v1195 = vmul.f32 %v1090, %v1179
    %v1196 = vmul.f32 %v1091, %v1180
    %v1197 = vmul.f32 %v1092, %v1181
    %v1198 = vadd.f32 %v1194, %v1196
    %v1199 = vadd.f32 %v1195, %v1197
    %v1200 = vld [vmem:[%s1115 + $0x30] sm:$0xff]
    %v1201 = vld [vmem:[%s1115 + $0x38] sm:$0xff]
    %v1202 = vadd.f32 %v1200, %v1198
    %v1203 = vadd.f32 %v1201, %v1199
    %1204 = vst [vmem:[%s1115 + $0x30] sm:$0xff] %v1202
    %1205 = vst [vmem:[%s1115 + $0x38] sm:$0xff] %v1203
    %v1206 = vld [vmem:[#allocation2 + $0x280] sm:$0xff]
    %v1207 = vld [vmem:[#allocation2 + $0x288] sm:$0xff]
    %v1208 = vld [vmem:[#allocation2 + $0x290] sm:$0xff]
    %v1209 = vld [vmem:[#allocation2 + $0x298] sm:$0xff]
    %v1210 = vmul.f32 %v1065, %v1206
    %v1211 = vmul.f32 %v1066, %v1207
    %v1212 = vmul.f32 %v1067, %v1208
    %v1213 = vmul.f32 %v1068, %v1209
    %v1214 = vadd.f32 %v1210, %v1212
    %v1215 = vadd.f32 %v1211, %v1213
    %v1216 = vld [vmem:[#allocation3 + $0x40] sm:$0xff]
    %v1217 = vld [vmem:[#allocation3 + $0x48] sm:$0xff]
    %v1218 = vadd.f32 %v1216, %v1214
    %v1219 = vadd.f32 %v1217, %v1215
    %1220 = vst [vmem:[#allocation3 + $0x40] sm:$0xff] %v1218
    %1221 = vst [vmem:[#allocation3 + $0x48] sm:$0xff] %v1219
    %v1222 = vmul.f32 %v1089, %v1206
    %v1223 = vmul.f32 %v1090, %v1207
    %v1224 = vmul.f32 %v1091, %v1208
    %v1225 = vmul.f32 %v1092, %v1209
    %v1226 = vadd.f32 %v1222, %v1224
    %v1227 = vadd.f32 %v1223, %v1225
    %v1228 = vld [vmem:[%s1115 + $0x40] sm:$0xff]
    %v1229 = vld [vmem:[%s1115 + $0x48] sm:$0xff]
    %v1230 = vadd.f32 %v1228, %v1226
    %v1231 = vadd.f32 %v1229, %v1227
    %1232 = vst [vmem:[%s1115 + $0x40] sm:$0xff] %v1230
    %1233 = vst [vmem:[%s1115 + $0x48] sm:$0xff] %v1231
    %v1234 = vld [vmem:[#allocation2 + $0x2a0] sm:$0xff]
    %v1235 = vld [vmem:[#allocation2 + $0x2a8] sm:$0xff]
    %v1236 = vld [vmem:[#allocation2 + $0x2b0] sm:$0xff]
    %v1237 = vld [vmem:[#allocation2 + $0x2b8] sm:$0xff]
    %v1238 = vmul.f32 %v1065, %v1234
    %v1239 = vmul.f32 %v1066, %v1235
    %v1240 = vmul.f32 %v1067, %v1236
    %v1241 = vmul.f32 %v1068, %v1237
    %v1242 = vadd.f32 %v1238, %v1240
    %v1243 = vadd.f32 %v1239, %v1241
    %v1244 = vld [vmem:[#allocation3 + $0x50] sm:$0xff]
    %v1245 = vld [vmem:[#allocation3 + $0x58] sm:$0xff]
    %v1246 = vadd.f32 %v1244, %v1242
    %v1247 = vadd.f32 %v1245, %v1243
    %1248 = vst [vmem:[#allocation3 + $0x50] sm:$0xff] %v1246
    %1249 = vst [vmem:[#allocation3 + $0x58] sm:$0xff] %v1247
    %v1250 = vmul.f32 %v1089, %v1234
    %v1251 = vmul.f32 %v1090, %v1235
    %v1252 = vmul.f32 %v1091, %v1236
    %v1253 = vmul.f32 %v1092, %v1237
    %v1254 = vadd.f32 %v1250, %v1252
    %v1255 = vadd.f32 %v1251, %v1253
    %v1256 = vld [vmem:[%s1115 + $0x50] sm:$0xff]
    %v1257 = vld [vmem:[%s1115 + $0x58] sm:$0xff]
    %v1258 = vadd.f32 %v1256, %v1254
    %v1259 = vadd.f32 %v1257, %v1255
    %1260 = vst [vmem:[%s1115 + $0x50] sm:$0xff] %v1258
    %1261 = vst [vmem:[%s1115 + $0x58] sm:$0xff] %v1259
    %v1262 = vld [vmem:[#allocation2 + $0x2c0] sm:$0xff]
    %v1263 = vld [vmem:[#allocation2 + $0x2c8] sm:$0xff]
    %v1264 = vld [vmem:[#allocation2 + $0x2d0] sm:$0xff]
    %v1265 = vld [vmem:[#allocation2 + $0x2d8] sm:$0xff]
    %v1266 = vmul.f32 %v1065, %v1262
    %v1267 = vmul.f32 %v1066, %v1263
    %v1268 = vmul.f32 %v1067, %v1264
    %v1269 = vmul.f32 %v1068, %v1265
    %v1270 = vadd.f32 %v1266, %v1268
    %v1271 = vadd.f32 %v1267, %v1269
    %v1272 = vld [vmem:[#allocation3 + $0x60] sm:$0xff]
    %v1273 = vld [vmem:[#allocation3 + $0x68] sm:$0xff]
    %v1274 = vadd.f32 %v1272, %v1270
    %v1275 = vadd.f32 %v1273, %v1271
    %1276 = vst [vmem:[#allocation3 + $0x60] sm:$0xff] %v1274
    %1277 = vst [vmem:[#allocation3 + $0x68] sm:$0xff] %v1275
    %v1278 = vmul.f32 %v1089, %v1262
    %v1279 = vmul.f32 %v1090, %v1263
    %v1280 = vmul.f32 %v1091, %v1264
    %v1281 = vmul.f32 %v1092, %v1265
    %v1282 = vadd.f32 %v1278, %v1280
    %v1283 = vadd.f32 %v1279, %v1281
    %v1284 = vld [vmem:[%s1115 + $0x60] sm:$0xff]
    %v1285 = vld [vmem:[%s1115 + $0x68] sm:$0xff]
    %v1286 = vadd.f32 %v1284, %v1282
    %v1287 = vadd.f32 %v1285, %v1283
    %1288 = vst [vmem:[%s1115 + $0x60] sm:$0xff] %v1286
    %1289 = vst [vmem:[%s1115 + $0x68] sm:$0xff] %v1287
    %v1290 = vld [vmem:[#allocation2 + $0x2e0] sm:$0xff]
    %v1291 = vld [vmem:[#allocation2 + $0x2e8] sm:$0xff]
    %v1292 = vld [vmem:[#allocation2 + $0x2f0] sm:$0xff]
    %v1293 = vld [vmem:[#allocation2 + $0x2f8] sm:$0xff]
    %v1294 = vmul.f32 %v1065, %v1290
    %v1295 = vmul.f32 %v1066, %v1291
    %v1296 = vmul.f32 %v1067, %v1292
    %v1297 = vmul.f32 %v1068, %v1293
    %v1298 = vadd.f32 %v1294, %v1296
    %v1299 = vadd.f32 %v1295, %v1297
    %v1300 = vld [vmem:[#allocation3 + $0x70] sm:$0xff]
    %v1301 = vld [vmem:[#allocation3 + $0x78] sm:$0xff]
    %v1302 = vadd.f32 %v1300, %v1298
    %v1303 = vadd.f32 %v1301, %v1299
    %1304 = vst [vmem:[#allocation3 + $0x70] sm:$0xff] %v1302
    %1305 = vst [vmem:[#allocation3 + $0x78] sm:$0xff] %v1303
    %v1306 = vmul.f32 %v1089, %v1290
    %v1307 = vmul.f32 %v1090, %v1291
    %v1308 = vmul.f32 %v1091, %v1292
    %v1309 = vmul.f32 %v1092, %v1293
    %v1310 = vadd.f32 %v1306, %v1308
    %v1311 = vadd.f32 %v1307, %v1309
    %v1312 = vld [vmem:[%s1115 + $0x70] sm:$0xff]
    %v1313 = vld [vmem:[%s1115 + $0x78] sm:$0xff]
    %v1314 = vadd.f32 %v1312, %v1310
    %v1315 = vadd.f32 %v1313, %v1311
    %1316 = vst [vmem:[%s1115 + $0x70] sm:$0xff] %v1314
    %1317 = vst [vmem:[%s1115 + $0x78] sm:$0xff] %v1315
    // Predicated region
    $region18: #{tpu_custom_call.1} parent=1 // pred_check
      %p1318 = pneg %p37
    $region19: #{tpu_custom_call.1} parent=1 // pred_check_branch
      %1320 = sbr.rel (%p1318) target = $region21
    $region20: #{tpu_custom_call.1} parent=1 // pred_region
      %v1321 = vld [vmem:[#allocation3] sm:$0xff]
      %v1322 = vld [vmem:[#allocation3 + $0x8] sm:$0xff]
      %v1323 = vld [vmem:[#allocation3 + $0x10] sm:$0xff]
      %v1324 = vld [vmem:[#allocation3 + $0x18] sm:$0xff]
      %v1325 = vld [vmem:[#allocation3 + $0x20] sm:$0xff]
      %v1326 = vld [vmem:[#allocation3 + $0x28] sm:$0xff]
      %v1327 = vld [vmem:[#allocation3 + $0x30] sm:$0xff]
      %v1328 = vld [vmem:[#allocation3 + $0x38] sm:$0xff]
      %v1329 = vld [vmem:[#allocation3 + $0x40] sm:$0xff]
      %v1330 = vld [vmem:[#allocation3 + $0x48] sm:$0xff]
      %v1331 = vld [vmem:[#allocation3 + $0x50] sm:$0xff]
      %v1332 = vld [vmem:[#allocation3 + $0x58] sm:$0xff]
      %v1333 = vld [vmem:[#allocation3 + $0x60] sm:$0xff]
      %v1334 = vld [vmem:[#allocation3 + $0x68] sm:$0xff]
      %v1335 = vld [vmem:[#allocation3 + $0x70] sm:$0xff]
      %v1336 = vld [vmem:[#allocation3 + $0x78] sm:$0xff]
      %v1337 = vld [vmem:[#allocation3 + $0x80] sm:$0xff]
      %v1338 = vld [vmem:[#allocation3 + $0x88] sm:$0xff]
      %v1339 = vld [vmem:[#allocation3 + $0x90] sm:$0xff]
      %v1340 = vld [vmem:[#allocation3 + $0x98] sm:$0xff]
      %v1341 = vld [vmem:[#allocation3 + $0xa0] sm:$0xff]
      %v1342 = vld [vmem:[#allocation3 + $0xa8] sm:$0xff]
      %v1343 = vld [vmem:[#allocation3 + $0xb0] sm:$0xff]
      %v1344 = vld [vmem:[#allocation3 + $0xb8] sm:$0xff]
      %v1345 = vld [vmem:[#allocation3 + $0xc0] sm:$0xff]
      %v1346 = vld [vmem:[#allocation3 + $0xc8] sm:$0xff]
      %v1347 = vld [vmem:[#allocation3 + $0xd0] sm:$0xff]
      %v1348 = vld [vmem:[#allocation3 + $0xd8] sm:$0xff]
      %v1349 = vld [vmem:[#allocation3 + $0xe0] sm:$0xff]
      %v1350 = vld [vmem:[#allocation3 + $0xe8] sm:$0xff]
      %v1351 = vld [vmem:[#allocation3 + $0xf0] sm:$0xff]
      %v1352 = vld [vmem:[#allocation3 + $0xf8] sm:$0xff]
      %v1353 = vadd.f32 %v1321, %v1322
      %1354 = vadd.xlane.f32.xlu0 %v1353
      %v1355 = vpop.xlane.xlu0 %1354
      %v1356 = vadd.f32 %v1323, %v1324
      %1357 = vadd.xlane.f32.xlu0 %v1356
      %v1358 = vpop.xlane.xlu0 %1357
      %v1359 = vadd.f32 %v1325, %v1326
      %1360 = vadd.xlane.f32.xlu0 %v1359
      %v1361 = vpop.xlane.xlu0 %1360
      %v1362 = vadd.f32 %v1327, %v1328
      %1363 = vadd.xlane.f32.xlu0 %v1362
      %v1364 = vpop.xlane.xlu0 %1363
      %v1365 = vadd.f32 %v1329, %v1330
      %1366 = vadd.xlane.f32.xlu0 %v1365
      %v1367 = vpop.xlane.xlu0 %1366
      %v1368 = vadd.f32 %v1331, %v1332
      %1369 = vadd.xlane.f32.xlu0 %v1368
      %v1370 = vpop.xlane.xlu0 %1369
      %v1371 = vadd.f32 %v1333, %v1334
      %1372 = vadd.xlane.f32.xlu0 %v1371
      %v1373 = vpop.xlane.xlu0 %1372
      %v1374 = vadd.f32 %v1335, %v1336
      %1375 = vadd.xlane.f32.xlu0 %v1374
      %v1376 = vpop.xlane.xlu0 %1375
      %v1377 = vadd.f32 %v1337, %v1338
      %1378 = vadd.xlane.f32.xlu0 %v1377
      %v1379 = vpop.xlane.xlu0 %1378
      %v1380 = vadd.f32 %v1339, %v1340
      %1381 = vadd.xlane.f32.xlu0 %v1380
      %v1382 = vpop.xlane.xlu0 %1381
      %v1383 = vadd.f32 %v1341, %v1342
      %1384 = vadd.xlane.f32.xlu0 %v1383
      %v1385 = vpop.xlane.xlu0 %1384
      %v1386 = vadd.f32 %v1343, %v1344
      %1387 = vadd.xlane.f32.xlu0 %v1386
      %v1388 = vpop.xlane.xlu0 %1387
      %v1389 = vadd.f32 %v1345, %v1346
      %1390 = vadd.xlane.f32.xlu0 %v1389
      %v1391 = vpop.xlane.xlu0 %1390
      %v1392 = vadd.f32 %v1347, %v1348
      %1393 = vadd.xlane.f32.xlu0 %v1392
      %v1394 = vpop.xlane.xlu0 %1393
      %v1395 = vadd.f32 %v1349, %v1350
      %1396 = vadd.xlane.f32.xlu0 %v1395
      %v1397 = vpop.xlane.xlu0 %1396
      %v1398 = vadd.f32 %v1351, %v1352
      %1399 = vadd.xlane.f32.xlu0 %v1398
      %v1400 = vpop.xlane.xlu0 %1399
      %v1417 = vlaneseq
      %v1418 = vand.u32 %v1417, 127
      %v1419 = vlaneseq
      %v1420 = vshrl.u32 %v1419, 7
      %v1421 = vsub.s32 %v1418, %v1420
      %v1422 = vrot.slane %v1355, %v1421
      %v1423 = vadd.s32 %v1418, 4294967288
      %v1424 = vlaneseq
      %v1425 = vshrl.u32 %v1424, 7
      %v1426 = vsub.s32 %v1423, %v1425
      %v1427 = vrot.slane %v1358, %v1426
      %vm1428 = vcmask 130112
      %v1429 = vsel %vm1428, %v1427, %v1422
      %v1430 = vadd.s32 %v1418, 4294967280
      %v1431 = vlaneseq
      %v1432 = vshrl.u32 %v1431, 7
      %v1433 = vsub.s32 %v1430, %v1432
      %v1434 = vrot.slane %v1361, %v1433
      %vm1435 = vcmask 195712
      %v1436 = vsel %vm1435, %v1434, %v1429
      %v1437 = vadd.s32 %v1418, 4294967272
      %v1438 = vlaneseq
      %v1439 = vshrl.u32 %v1438, 7
      %v1440 = vsub.s32 %v1437, %v1439
      %v1441 = vrot.slane %v1364, %v1440
      %vm1442 = vcmask 261312
      %v1443 = vsel %vm1442, %v1441, %v1436
      %v1444 = vadd.s32 %v1418, 4294967264
      %v1445 = vlaneseq
      %v1446 = vshrl.u32 %v1445, 7
      %v1447 = vsub.s32 %v1444, %v1446
      %v1448 = vrot.slane %v1367, %v1447
      %vm1449 = vcmask 326912
      %v1450 = vsel %vm1449, %v1448, %v1443
      %v1451 = vadd.s32 %v1418, 4294967256
      %v1452 = vlaneseq
      %v1453 = vshrl.u32 %v1452, 7
      %v1454 = vsub.s32 %v1451, %v1453
      %v1455 = vrot.slane %v1370, %v1454
      %vm1456 = vcmask 392512
      %v1457 = vsel %vm1456, %v1455, %v1450
      %v1458 = vadd.s32 %v1418, 4294967248
      %v1459 = vlaneseq
      %v1460 = vshrl.u32 %v1459, 7
      %v1461 = vsub.s32 %v1458, %v1460
      %v1462 = vrot.slane %v1373, %v1461
      %vm1463 = vcmask 458112
      %v1464 = vsel %vm1463, %v1462, %v1457
      %v1465 = vadd.s32 %v1418, 4294967240
      %v1466 = vlaneseq
      %v1467 = vshrl.u32 %v1466, 7
      %v1468 = vsub.s32 %v1465, %v1467
      %v1469 = vrot.slane %v1376, %v1468
      %vm1470 = vcmask 523712
      %v1471 = vsel %vm1470, %v1469, %v1464
      %v1472 = vlaneseq
      %v1473 = vshrl.u32 %v1472, 7
      %v1474 = vsub.s32 %v1418, %v1473
      %v1475 = vrot.slane %v1379, %v1474
      %v1476 = vlaneseq
      %v1477 = vshrl.u32 %v1476, 7
      %v1478 = vsub.s32 %v1423, %v1477
      %v1479 = vrot.slane %v1382, %v1478
      %v1480 = vsel %vm1428, %v1479, %v1475
      %v1481 = vlaneseq
      %v1482 = vshrl.u32 %v1481, 7
      %v1483 = vsub.s32 %v1430, %v1482
      %v1484 = vrot.slane %v1385, %v1483
      %v1485 = vsel %vm1435, %v1484, %v1480
      %v1486 = vlaneseq
      %v1487 = vshrl.u32 %v1486, 7
      %v1488 = vsub.s32 %v1437, %v1487
      %v1489 = vrot.slane %v1388, %v1488
      %v1490 = vsel %vm1442, %v1489, %v1485
      %v1491 = vlaneseq
      %v1492 = vshrl.u32 %v1491, 7
      %v1493 = vsub.s32 %v1444, %v1492
      %v1494 = vrot.slane %v1391, %v1493
      %v1495 = vsel %vm1449, %v1494, %v1490
      %v1496 = vlaneseq
      %v1497 = vshrl.u32 %v1496, 7
      %v1498 = vsub.s32 %v1451, %v1497
      %v1499 = vrot.slane %v1394, %v1498
      %v1500 = vsel %vm1456, %v1499, %v1495
      %v1501 = vlaneseq
      %v1502 = vshrl.u32 %v1501, 7
      %v1503 = vsub.s32 %v1458, %v1502
      %v1504 = vrot.slane %v1397, %v1503
      %v1505 = vsel %vm1463, %v1504, %v1500
      %v1506 = vlaneseq
      %v1507 = vshrl.u32 %v1506, 7
      %v1508 = vsub.s32 %v1465, %v1507
      %v1509 = vrot.slane %v1400, %v1508
      %v1510 = vsel %vm1470, %v1509, %v1505
      %vm1511 = vcmask 1041409
      %v1512 = vsel %vm1511, %v1510, %v1471
      %vm1514 = vcmask 517120
      %1515 = vst.msk [vmem:[#allocation4] sm:$0x3] %vm1514, %v1512
    $region21: #{tpu_custom_call.1} parent=1 // pred_fallthru
      _
    // Predicated region
    $region22: #{tpu_custom_call.1} parent=1 // pred_check
      _
    $region23: #{tpu_custom_call.1} parent=1 // pred_check_branch
      %1517 = sbr.rel (0) target = $region25
    $region24: #{tpu_custom_call.1} parent=1 // pred_region
      %s1519 = ssub.s32 32, 32
      %1520 = vsyncadd [#allocation5], %s1519
      %s1522 = sshll.u32 [#allocation4], 4
      %s1523 = int_to_ptr.vmem [resolvable:$true] %s1522
      %1525 = dma.vmem_to_hbm [thread:$0]  %s1523, 32, %s3, [#allocation5]
    $region25: #{tpu_custom_call.1} parent=1 // pred_fallthru
      _
    // Predicated region
    $region26: #{tpu_custom_call.1} parent=1 // pred_check
      _
    $region27: #{tpu_custom_call.1} parent=1 // pred_check_branch
      %1527 = sbr.rel (0) target = $region29
    $region28: #{tpu_custom_call.1} parent=1 // pred_region
      %1528 = dma.done [#allocation5], 32
    $region29: #{tpu_custom_call.1} parent=1 // pred_fallthru
      _
    %1529 = vsyncpa [#allocation5], 1

</llo_original>
